<compile_context>
chip_gen: v5e
topology: v5e:2x2
jax: 0.10.0
libtpu: 0.0.40
codegen_flags: <defaults>
</compile_context>

<pallas_src>
import functools

import jax
import jax.numpy as jnp
from jax.experimental import pallas as pl
from jax.experimental.pallas import tpu as pltpu


def _mha_kernel(L, P,
                w_ref, pe_ref, feats_ref,
                out_ref, s_out_ref,
                s_acc):
    """One (n, spatial-tile) grid step.

    w_ref    : (4, C)         packed params: rows [w_q, w_k, w_o, (b_q, b_k, 0..)]
    pe_ref   : (1, P, C)      positional encoding for batch n
    feats_ref: (1, P, C, TL)  original features (no pe), L on the lane axis
    out_ref  : (1, P, C, TL)  w_o * context + feats
    s_out_ref: (1, P, 1)      mean attention per key proposal (written last step)
    s_acc    : (P, 1) f32     VMEM scratch accumulator for s
    """
    lt = pl.program_id(1)
    n_lt = pl.num_programs(1)

    @pl.when(lt == 0)
    def _():
        s_acc[...] = jnp.zeros_like(s_acc)

    feats = feats_ref[0]                        # (P, C, TL) original features
    pe = pe_ref[0]                              # (P, C)
    x = feats + pe[:, :, None]                  # v = feats + pe
    w = w_ref[...]                              # (4, C)

    # --- q/k projections: Linear(C, 1) per (proposal, location) -------------
    # Fused: one broadcast-multiply + one sublane-axis reduction yields both.
    wqk = w[0:2, :]                                                  # (2, C)
    qk = jnp.sum(x[None, :, :, :] * wqk[:, None, :, None], axis=2)   # (2, P, TL)
    q = qk[0] + w[3:4, 0:1]                                          # (P, TL) + b_q
    k = qk[1] + w[3:4, 1:2]                                          # (P, TL) + b_k

    # --- attention: key axis leading so softmax / ctx stay per-lane VPU work -
    # scores[j, i, l] = k[j, l] * q[i, l]   (head dim is 1 -> no 1/sqrt(d))
    scores = k[:, None, :] * q[None, :, :]                    # (Pk, Pq, TL)
    m = jnp.max(scores, axis=0, keepdims=True)
    e = jnp.exp(scores - m)
    attn = e / jnp.sum(e, axis=0, keepdims=True)              # softmax over keys

    # --- s: running sum of attention over query proposals and locations -----
    red = jnp.sum(attn, axis=1)                               # (Pk, TL)
    s_acc[...] += jnp.sum(red, axis=1, keepdims=True)         # (Pk, 1)

    # --- context[i, c, l] = sum_j attn[j, i, l] * x[j, c, l] -----------------
    # P is tiny (8): an unrolled broadcast-multiply-add on the VPU beats the
    # MXU (8x8 @ 8x32 tiles would be almost pure drain latency).
    ctx = attn[0][:, None, :] * x[0:1, :, :]                  # (Pq, C, TL)
    for j in range(1, P):
        ctx = ctx + attn[j][:, None, :] * x[j:j + 1, :, :]

    # --- output: w_o * context + ORIGINAL feats (residual without pe) -------
    # TODO(synk): dropout on attention / output is eval-mode identity here.
    wo = w[2:3, :]                                            # (1, C)
    out_ref[0] = wo[:, :, None] * ctx + feats

    @pl.when(lt == n_lt - 1)
    def _():
        s_out_ref[0] = s_acc[...] * jnp.float32(1.0 / (L * P))


def _choose_tl(L, P, C, budget_bytes=12 * 1024 * 1024):
    """Largest lane-dense spatial tile whose VMEM footprint fits the budget.

    Per spatial element we account for the double-buffered feats + out blocks
    (4 * P * C * 4 B) plus worst-case live intermediates (~6 arrays of (P, C)
    and ~4 of (P, P) f32).  12 MiB stays well under the scoped-VMEM limit on
    every generation, including v7x (64 MiB physical / 32 MiB scoped default).
    """
    per_l = (4 + 6) * P * C * 4 + 4 * P * P * 4
    cap = max(1, budget_bytes // per_l)
    if L <= cap:
        return L                          # whole spatial axis in one block
    tl = (cap // 128) * 128               # lane-dense tiles only
    while tl >= 128 and L % tl != 0:
        tl -= 128
    return tl if tl >= 128 else L


def multi_head_attention(feats, logits, deltas, params, *, num_heads=1, tl=None):
    """feats: (N, P, C, H, W) f32; logits: (N, P, K) (shape-only in the module);
    deltas: (N, P, 2) int32 indices into the positional-encoding table."""
    del logits  # unused by the computation (matches the PyTorch forward)
    N, P, C, H, W = feats.shape
    assert num_heads == 1, "reference forward is only shape-valid for 1 head"
    L = H * W
    if tl is None:
        tl = _choose_tl(L, P, C)
    assert L % tl == 0

    # Positional-encoding integer gather (glue, plain JAX).
    pe_tab = params["pe"]                                        # (max_len, 2, C//2)
    pe = jnp.concatenate([pe_tab[deltas[..., 0], 0],
                          pe_tab[deltas[..., 1], 1]], axis=-1)   # (N, P, C)

    # Zero-copy relayout: H, W contiguous, so (N,P,C,H,W) -> (N,P,C,L).
    feats_r = feats.reshape(N, P, C, L)

    # Pack all tiny parameters into a single VMEM tile (one buffer, one DMA):
    # rows 0..2 = w_q, w_k, w_o ; row 3 holds the two scalar biases.
    wpack = jnp.zeros((4, C), jnp.float32)
    wpack = wpack.at[0].set(jnp.asarray(params["wq"], jnp.float32))
    wpack = wpack.at[1].set(jnp.asarray(params["wk"], jnp.float32))
    wpack = wpack.at[2].set(jnp.asarray(params["wo"], jnp.float32))
    wpack = wpack.at[3, 0].set(jnp.float32(params["bq"]))
    wpack = wpack.at[3, 1].set(jnp.float32(params["bk"]))

    kernel = functools.partial(_mha_kernel, L, P)

    out_r, s_r = pl.pallas_call(
        kernel,
        out_shape=(jax.ShapeDtypeStruct((N, P, C, L), jnp.float32),
                   jax.ShapeDtypeStruct((N, P, 1), jnp.float32)),
        grid_spec=pltpu.PrefetchScalarGridSpec(
            num_scalar_prefetch=0,
            grid=(N, L // tl),                      # reduction (spatial) axis last
            in_specs=[
                pl.BlockSpec((4, C), lambda n, l: (0, 0)),               # params
                pl.BlockSpec((1, P, C), lambda n, l: (n, 0, 0)),         # pe
                pl.BlockSpec((1, P, C, tl), lambda n, l: (n, 0, 0, l)),  # feats
            ],
            out_specs=[
                pl.BlockSpec((1, P, C, tl), lambda n, l: (n, 0, 0, l)),  # output
                pl.BlockSpec((1, P, 1), lambda n, l: (n, 0, 0)),         # s
            ],
            scratch_shapes=[pltpu.VMEM((P, 1), jnp.float32)],
        ),
        compiler_params=pltpu.CompilerParams(
            # N "parallel" feeds both v7x TensorCores; the spatial axis that
            # the s accumulator reduces over must stay "arbitrary".
            dimension_semantics=("parallel", "arbitrary")),
    )(wpack, pe, feats_r)

    out = out_r.reshape(N, P, C, H, W)              # zero-copy back to module layout
    s = s_r[:, :, 0]                                # (N, P)
    return out, s


def _reference(feats, deltas, params):
    """Pure-JAX, exact-f32 mirror of the PyTorch forward (num_heads=1, eval)."""
    N, P, C, H, W = feats.shape
    pe1 = params["pe"][deltas[..., 0], 0]
    pe2 = params["pe"][deltas[..., 1], 1]
    pe = jnp.concatenate([pe1, pe2], -1)                          # (N, P, C)
    x = feats + pe[..., None, None]
    x = jnp.transpose(x, (0, 3, 4, 1, 2)).reshape(-1, P, C)       # (NHW, P, C)
    q = jnp.sum(x * params["wq"], axis=-1, keepdims=True) + params["bq"]
    k = jnp.sum(x * params["wk"], axis=-1, keepdims=True) + params["bk"]
    scores = q * jnp.swapaxes(k, -1, -2)                          # (NHW, P, P)
    attn = jax.nn.softmax(scores, axis=-1)
    s = attn.reshape(N, H * W, P, P).mean(axis=(1, 2))            # (N, P)
    ctx = jnp.sum(attn[..., None] * x[:, None, :, :], axis=2)     # (NHW, P, C)
    out = params["wo"] * ctx
    out = out.reshape(N, H, W, P, C).transpose(0, 3, 4, 1, 2)     # (N, P, C, H, W)
    return out + feats, s


if __name__ == "__main__":
    key = jax.random.PRNGKey(0)
    N, P, K, C, H, W = 2, 8, 5, 32, 16, 16       # in_dim=C=32, num_heads=1, L=256
    max_len = 32
    ks = jax.random.split(key, 8)

    feats = jax.random.normal(ks[0], (N, P, C, H, W), jnp.float32)
    logits = jax.random.normal(ks[1], (N, P, K), jnp.float32)
    deltas = jax.random.randint(ks[2], (N, P, 2), 0, max_len, dtype=jnp.int32)

    # Deterministic synthetic parameters (module shapes; values chosen nonzero
    # so the attention path is actually exercised — the module's own init makes
    # w_q exactly zero, which would yield a uniform softmax).
    params = dict(
        pe=0.1 * jax.random.normal(ks[3], (max_len, 2, C // 2), jnp.float32),
        wq=0.05 * jax.random.normal(ks[4], (C,), jnp.float32),
        bq=jnp.float32(0.01),
        wk=0.01 * jax.random.normal(ks[5], (C,), jnp.float32),
        bk=jnp.float32(0.01),
        wo=0.5 * jax.random.normal(ks[6], (C,), jnp.float32),
    )

    out, s = jax.block_until_ready(
        multi_head_attention(feats, logits, deltas, params, num_heads=1))

    out_ref, s_ref = _reference(feats, deltas, params)
    assert out.shape == (N, P, C, H, W) and s.shape == (N, P)
    assert jnp.allclose(out, out_ref, atol=1e-4, rtol=1e-4), \
        float(jnp.max(jnp.abs(out - out_ref)))
    assert jnp.allclose(s, s_ref, atol=1e-5, rtol=1e-5), \
        float(jnp.max(jnp.abs(s - s_ref)))

    print("KERNEL_OK")
</pallas_src>

<mosaic_0001>
module attributes {stable_mosaic.version = 11 : i64} {
  func.func @_mha_kernel(%arg0: i32, %arg1: i32, %arg2: memref<4x32xf32, #tpu.memory_space<vmem>>, %arg3: memref<1x8x32xf32, #tpu.memory_space<vmem>>, %arg4: memref<1x8x32x256xf32, #tpu.memory_space<vmem>>, %arg5: memref<1x8x32x256xf32, #tpu.memory_space<vmem>>, %arg6: memref<1x8x1xf32, #tpu.memory_space<vmem>>, %arg7: memref<8x1xf32, #tpu.memory_space<vmem>>) attributes {dimension_semantics = [#tpu.dimension_semantics<parallel>, #tpu.dimension_semantics<arbitrary>], iteration_bounds = array<i64: 2, 1>, scalar_prefetch = 0 : i64, scratch_operands = 1 : i64, tpu.core_type = #tpu.core_type<tc>, window_params = [{pipeline_mode = #tpu.pipeline_mode<synchronous>, transform_indices = @transform_0, window_bounds = array<i64: 4, 32>}, {transform_indices = @transform_1, window_bounds = array<i64: 1, 8, 32>}, {transform_indices = @transform_2, window_bounds = array<i64: 1, 8, 32, 256>}, {transform_indices = @transform_3, window_bounds = array<i64: 1, 8, 32, 256>}, {transform_indices = @transform_4, window_bounds = array<i64: 1, 8, 1>}]} {
    %c0_i32 = arith.constant 0 : i32
    %0 = arith.cmpi eq, %arg1, %c0_i32 : i32
    %1 = arith.extui %0 : i1 to i32
    %c0_i32_0 = arith.constant 0 : i32
    %2 = arith.cmpi ne, %1, %c0_i32_0 : i32
    scf.if %2 {
      %cst_23 = arith.constant 0.000000e+00 : f32
      %122 = vector.broadcast %cst_23 : f32 to vector<8x1xf32>
      %c0_24 = arith.constant 0 : index
      %c0_25 = arith.constant 0 : index
      %123 = vector.load %arg7[%c0_24, %c0_25] : memref<8x1xf32, #tpu.memory_space<vmem>>, vector<8x1xf32>
      tpu.vector_store %arg7[%c0_24, %c0_25], %122 {strides = array<i32>} : memref<8x1xf32, #tpu.memory_space<vmem>>, vector<8x1xf32>,
    } else {
    }
    %c0 = arith.constant 0 : index
    %c0_1 = arith.constant 0 : index
    %c0_2 = arith.constant 0 : index
    %c0_3 = arith.constant 0 : index
    %3 = vector.load %arg4[%c0, %c0_1, %c0_2, %c0_3] : memref<1x8x32x256xf32, #tpu.memory_space<vmem>>, vector<1x8x32x256xf32>
    %4 = vector.shape_cast %3 : vector<1x8x32x256xf32> to vector<8x32x256xf32>
    %c0_4 = arith.constant 0 : index
    %c0_5 = arith.constant 0 : index
    %c0_6 = arith.constant 0 : index
    %5 = vector.load %arg3[%c0_4, %c0_5, %c0_6] : memref<1x8x32xf32, #tpu.memory_space<vmem>>, vector<1x8x32xf32>
    %6 = vector.shape_cast %5 : vector<1x8x32xf32> to vector<8x32xf32>
    %7 = vector.shape_cast %6 : vector<8x32xf32> to vector<8x32x1xf32>
    %8 = vector.broadcast %7 : vector<8x32x1xf32> to vector<8x32x256xf32>
    %9 = arith.addf %4, %8 : vector<8x32x256xf32>
    %c0_7 = arith.constant 0 : index
    %c0_8 = arith.constant 0 : index
    %10 = vector.load %arg2[%c0_7, %c0_8] : memref<4x32xf32, #tpu.memory_space<vmem>>, vector<4x32xf32>
    %11 = vector.extract_strided_slice %10 {offsets = [0, 0], sizes = [2, 32], strides = [1, 1]} : vector<4x32xf32> to vector<2x32xf32>
    %12 = vector.shape_cast %9 : vector<8x32x256xf32> to vector<1x8x32x256xf32>
    %13 = vector.shape_cast %11 : vector<2x32xf32> to vector<2x1x32x1xf32>
    %14 = vector.broadcast %12 : vector<1x8x32x256xf32> to vector<2x8x32x256xf32>
    %15 = vector.broadcast %13 : vector<2x1x32x1xf32> to vector<2x8x32x256xf32>
    %16 = arith.mulf %14, %15 : vector<2x8x32x256xf32>
    %cst = arith.constant dense<0.000000e+00> : vector<2x8x256xf32>
    %17 = vector.multi_reduction <add>, %16, %cst [2] : vector<2x8x32x256xf32> to vector<2x8x256xf32>
    %18 = vector.extract_strided_slice %17 {offsets = [0, 0, 0], sizes = [1, 8, 256], strides = [1, 1, 1]} : vector<2x8x256xf32> to vector<1x8x256xf32>
    %19 = vector.shape_cast %18 : vector<1x8x256xf32> to vector<8x256xf32>
    %20 = vector.extract_strided_slice %10 {offsets = [3, 0], sizes = [1, 1], strides = [1, 1]} : vector<4x32xf32> to vector<1x1xf32>
    %21 = vector.broadcast %20 : vector<1x1xf32> to vector<8x256xf32>
    %22 = arith.addf %19, %21 : vector<8x256xf32>
    %23 = vector.extract_strided_slice %17 {offsets = [1, 0, 0], sizes = [1, 8, 256], strides = [1, 1, 1]} : vector<2x8x256xf32> to vector<1x8x256xf32>
    %24 = vector.shape_cast %23 : vector<1x8x256xf32> to vector<8x256xf32>
    %25 = vector.extract_strided_slice %10 {offsets = [3, 1], sizes = [1, 1], strides = [1, 1]} : vector<4x32xf32> to vector<1x1xf32>
    %26 = vector.broadcast %25 : vector<1x1xf32> to vector<8x256xf32>
    %27 = arith.addf %24, %26 : vector<8x256xf32>
    %28 = vector.shape_cast %27 : vector<8x256xf32> to vector<8x1x256xf32>
    %29 = vector.shape_cast %22 : vector<8x256xf32> to vector<1x8x256xf32>
    %30 = vector.broadcast %28 : vector<8x1x256xf32> to vector<8x8x256xf32>
    %31 = vector.broadcast %29 : vector<1x8x256xf32> to vector<8x8x256xf32>
    %32 = arith.mulf %30, %31 : vector<8x8x256xf32>
    %cst_9 = arith.constant dense<0xFF800000> : vector<8x256xf32>
    %33 = vector.multi_reduction <maximumf>, %32, %cst_9 [0] : vector<8x8x256xf32> to vector<8x256xf32>
    %34 = vector.shape_cast %33 : vector<8x256xf32> to vector<1x8x256xf32>
    %35 = vector.broadcast %34 : vector<1x8x256xf32> to vector<8x8x256xf32>
    %36 = arith.subf %32, %35 : vector<8x8x256xf32>
    %37 = math.exp %36 : vector<8x8x256xf32>
    %cst_10 = arith.constant dense<0.000000e+00> : vector<8x256xf32>
    %38 = vector.multi_reduction <add>, %37, %cst_10 [0] : vector<8x8x256xf32> to vector<8x256xf32>
    %39 = vector.shape_cast %38 : vector<8x256xf32> to vector<1x8x256xf32>
    %40 = vector.broadcast %39 : vector<1x8x256xf32> to vector<8x8x256xf32>
    %41 = arith.divf %37, %40 : vector<8x8x256xf32>
    %cst_11 = arith.constant dense<0.000000e+00> : vector<8x256xf32>
    %42 = vector.multi_reduction <add>, %41, %cst_11 [1] : vector<8x8x256xf32> to vector<8x256xf32>
    %c0_12 = arith.constant 0 : index
    %c0_13 = arith.constant 0 : index
    %43 = vector.load %arg7[%c0_12, %c0_13] : memref<8x1xf32, #tpu.memory_space<vmem>>, vector<8x1xf32>
    %cst_14 = arith.constant dense<0.000000e+00> : vector<8xf32>
    %44 = vector.multi_reduction <add>, %42, %cst_14 [1] : vector<8x256xf32> to vector<8xf32>
    %45 = vector.shape_cast %44 : vector<8xf32> to vector<8x1xf32>
    %46 = arith.addf %43, %45 : vector<8x1xf32>
    %c0_15 = arith.constant 0 : index
    %c0_16 = arith.constant 0 : index
    %47 = vector.load %arg7[%c0_15, %c0_16] : memref<8x1xf32, #tpu.memory_space<vmem>>, vector<8x1xf32>
    tpu.vector_store %arg7[%c0_15, %c0_16], %46 {strides = array<i32>} : memref<8x1xf32, #tpu.memory_space<vmem>>, vector<8x1xf32>,
    %48 = vector.extract_strided_slice %41 {offsets = [0, 0, 0], sizes = [1, 8, 256], strides = [1, 1, 1]} : vector<8x8x256xf32> to vector<1x8x256xf32>
    %49 = vector.shape_cast %48 : vector<1x8x256xf32> to vector<8x256xf32>
    %50 = vector.shape_cast %49 : vector<8x256xf32> to vector<8x1x256xf32>
    %51 = vector.extract_strided_slice %9 {offsets = [0, 0, 0], sizes = [1, 32, 256], strides = [1, 1, 1]} : vector<8x32x256xf32> to vector<1x32x256xf32>
    %52 = vector.broadcast %50 : vector<8x1x256xf32> to vector<8x32x256xf32>
    %53 = vector.broadcast %51 : vector<1x32x256xf32> to vector<8x32x256xf32>
    %54 = arith.mulf %52, %53 : vector<8x32x256xf32>
    %55 = vector.extract_strided_slice %41 {offsets = [1, 0, 0], sizes = [1, 8, 256], strides = [1, 1, 1]} : vector<8x8x256xf32> to vector<1x8x256xf32>
    %56 = vector.shape_cast %55 : vector<1x8x256xf32> to vector<8x256xf32>
    %57 = vector.shape_cast %56 : vector<8x256xf32> to vector<8x1x256xf32>
    %58 = vector.extract_strided_slice %9 {offsets = [1, 0, 0], sizes = [1, 32, 256], strides = [1, 1, 1]} : vector<8x32x256xf32> to vector<1x32x256xf32>
    %59 = vector.broadcast %57 : vector<8x1x256xf32> to vector<8x32x256xf32>
    %60 = vector.broadcast %58 : vector<1x32x256xf32> to vector<8x32x256xf32>
    %61 = arith.mulf %59, %60 : vector<8x32x256xf32>
    %62 = arith.addf %54, %61 : vector<8x32x256xf32>
    %63 = vector.extract_strided_slice %41 {offsets = [2, 0, 0], sizes = [1, 8, 256], strides = [1, 1, 1]} : vector<8x8x256xf32> to vector<1x8x256xf32>
    %64 = vector.shape_cast %63 : vector<1x8x256xf32> to vector<8x256xf32>
    %65 = vector.shape_cast %64 : vector<8x256xf32> to vector<8x1x256xf32>
    %66 = vector.extract_strided_slice %9 {offsets = [2, 0, 0], sizes = [1, 32, 256], strides = [1, 1, 1]} : vector<8x32x256xf32> to vector<1x32x256xf32>
    %67 = vector.broadcast %65 : vector<8x1x256xf32> to vector<8x32x256xf32>
    %68 = vector.broadcast %66 : vector<1x32x256xf32> to vector<8x32x256xf32>
    %69 = arith.mulf %67, %68 : vector<8x32x256xf32>
    %70 = arith.addf %62, %69 : vector<8x32x256xf32>
    %71 = vector.extract_strided_slice %41 {offsets = [3, 0, 0], sizes = [1, 8, 256], strides = [1, 1, 1]} : vector<8x8x256xf32> to vector<1x8x256xf32>
    %72 = vector.shape_cast %71 : vector<1x8x256xf32> to vector<8x256xf32>
    %73 = vector.shape_cast %72 : vector<8x256xf32> to vector<8x1x256xf32>
    %74 = vector.extract_strided_slice %9 {offsets = [3, 0, 0], sizes = [1, 32, 256], strides = [1, 1, 1]} : vector<8x32x256xf32> to vector<1x32x256xf32>
    %75 = vector.broadcast %73 : vector<8x1x256xf32> to vector<8x32x256xf32>
    %76 = vector.broadcast %74 : vector<1x32x256xf32> to vector<8x32x256xf32>
    %77 = arith.mulf %75, %76 : vector<8x32x256xf32>
    %78 = arith.addf %70, %77 : vector<8x32x256xf32>
    %79 = vector.extract_strided_slice %41 {offsets = [4, 0, 0], sizes = [1, 8, 256], strides = [1, 1, 1]} : vector<8x8x256xf32> to vector<1x8x256xf32>
    %80 = vector.shape_cast %79 : vector<1x8x256xf32> to vector<8x256xf32>
    %81 = vector.shape_cast %80 : vector<8x256xf32> to vector<8x1x256xf32>
    %82 = vector.extract_strided_slice %9 {offsets = [4, 0, 0], sizes = [1, 32, 256], strides = [1, 1, 1]} : vector<8x32x256xf32> to vector<1x32x256xf32>
    %83 = vector.broadcast %81 : vector<8x1x256xf32> to vector<8x32x256xf32>
    %84 = vector.broadcast %82 : vector<1x32x256xf32> to vector<8x32x256xf32>
    %85 = arith.mulf %83, %84 : vector<8x32x256xf32>
    %86 = arith.addf %78, %85 : vector<8x32x256xf32>
    %87 = vector.extract_strided_slice %41 {offsets = [5, 0, 0], sizes = [1, 8, 256], strides = [1, 1, 1]} : vector<8x8x256xf32> to vector<1x8x256xf32>
    %88 = vector.shape_cast %87 : vector<1x8x256xf32> to vector<8x256xf32>
    %89 = vector.shape_cast %88 : vector<8x256xf32> to vector<8x1x256xf32>
    %90 = vector.extract_strided_slice %9 {offsets = [5, 0, 0], sizes = [1, 32, 256], strides = [1, 1, 1]} : vector<8x32x256xf32> to vector<1x32x256xf32>
    %91 = vector.broadcast %89 : vector<8x1x256xf32> to vector<8x32x256xf32>
    %92 = vector.broadcast %90 : vector<1x32x256xf32> to vector<8x32x256xf32>
    %93 = arith.mulf %91, %92 : vector<8x32x256xf32>
    %94 = arith.addf %86, %93 : vector<8x32x256xf32>
    %95 = vector.extract_strided_slice %41 {offsets = [6, 0, 0], sizes = [1, 8, 256], strides = [1, 1, 1]} : vector<8x8x256xf32> to vector<1x8x256xf32>
    %96 = vector.shape_cast %95 : vector<1x8x256xf32> to vector<8x256xf32>
    %97 = vector.shape_cast %96 : vector<8x256xf32> to vector<8x1x256xf32>
    %98 = vector.extract_strided_slice %9 {offsets = [6, 0, 0], sizes = [1, 32, 256], strides = [1, 1, 1]} : vector<8x32x256xf32> to vector<1x32x256xf32>
    %99 = vector.broadcast %97 : vector<8x1x256xf32> to vector<8x32x256xf32>
    %100 = vector.broadcast %98 : vector<1x32x256xf32> to vector<8x32x256xf32>
    %101 = arith.mulf %99, %100 : vector<8x32x256xf32>
    %102 = arith.addf %94, %101 : vector<8x32x256xf32>
    %103 = vector.extract_strided_slice %41 {offsets = [7, 0, 0], sizes = [1, 8, 256], strides = [1, 1, 1]} : vector<8x8x256xf32> to vector<1x8x256xf32>
    %104 = vector.shape_cast %103 : vector<1x8x256xf32> to vector<8x256xf32>
    %105 = vector.shape_cast %104 : vector<8x256xf32> to vector<8x1x256xf32>
    %106 = vector.extract_strided_slice %9 {offsets = [7, 0, 0], sizes = [1, 32, 256], strides = [1, 1, 1]} : vector<8x32x256xf32> to vector<1x32x256xf32>
    %107 = vector.broadcast %105 : vector<8x1x256xf32> to vector<8x32x256xf32>
    %108 = vector.broadcast %106 : vector<1x32x256xf32> to vector<8x32x256xf32>
    %109 = arith.mulf %107, %108 : vector<8x32x256xf32>
    %110 = arith.addf %102, %109 : vector<8x32x256xf32>
    %111 = vector.extract_strided_slice %10 {offsets = [2, 0], sizes = [1, 32], strides = [1, 1]} : vector<4x32xf32> to vector<1x32xf32>
    %112 = vector.shape_cast %111 : vector<1x32xf32> to vector<1x32x1xf32>
    %113 = vector.broadcast %112 : vector<1x32x1xf32> to vector<8x32x256xf32>
    %114 = arith.mulf %113, %110 : vector<8x32x256xf32>
    %115 = arith.addf %114, %4 : vector<8x32x256xf32>
    %c0_17 = arith.constant 0 : index
    %c0_18 = arith.constant 0 : index
    %c0_19 = arith.constant 0 : index
    %c0_20 = arith.constant 0 : index
    %116 = vector.load %arg5[%c0_17, %c0_18, %c0_19, %c0_20] : memref<1x8x32x256xf32, #tpu.memory_space<vmem>>, vector<1x8x32x256xf32>
    %117 = vector.shape_cast %116 : vector<1x8x32x256xf32> to vector<8x32x256xf32>
    %118 = vector.shape_cast %115 : vector<8x32x256xf32> to vector<1x8x32x256xf32>
    tpu.vector_store %arg5[%c0_17, %c0_18, %c0_19, %c0_20], %118 {strides = array<i32>} : memref<1x8x32x256xf32, #tpu.memory_space<vmem>>, vector<1x8x32x256xf32>,
    %c0_i32_21 = arith.constant 0 : i32
    %119 = arith.cmpi eq, %arg1, %c0_i32_21 : i32
    %120 = arith.extui %119 : i1 to i32
    %c0_i32_22 = arith.constant 0 : i32
    %121 = arith.cmpi ne, %120, %c0_i32_22 : i32
    scf.if %121 {
      %c0_23 = arith.constant 0 : index
      %c0_24 = arith.constant 0 : index
      %122 = vector.load %arg7[%c0_23, %c0_24] : memref<8x1xf32, #tpu.memory_space<vmem>>, vector<8x1xf32>
      %cst_25 = arith.constant 4.8828125E-4 : f32
      %123 = vector.broadcast %cst_25 : f32 to vector<8x1xf32>
      %124 = arith.mulf %122, %123 : vector<8x1xf32>
      %c0_26 = arith.constant 0 : index
      %c0_27 = arith.constant 0 : index
      %c0_28 = arith.constant 0 : index
      %125 = vector.load %arg6[%c0_26, %c0_27, %c0_28] : memref<1x8x1xf32, #tpu.memory_space<vmem>>, vector<1x8x1xf32>
      %126 = vector.shape_cast %125 : vector<1x8x1xf32> to vector<8x1xf32>
      %127 = vector.shape_cast %124 : vector<8x1xf32> to vector<1x8x1xf32>
      tpu.vector_store %arg6[%c0_26, %c0_27, %c0_28], %127 {strides = array<i32>} : memref<1x8x1xf32, #tpu.memory_space<vmem>>, vector<1x8x1xf32>,
    } else {
    }
    return
  }
  func.func @transform_0(%arg0: i32, %arg1: i32) -> (i32, i32) {
    %c0_i32 = arith.constant 0 : i32
    %c0_i32_0 = arith.constant 0 : i32
    %c0_i32_1 = arith.constant 0 : i32
    return %c0_i32, %c0_i32_0 : i32, i32
  }
  func.func @transform_1(%arg0: i32, %arg1: i32) -> (i32, i32, i32) {
    %c0_i32 = arith.constant 0 : i32
    %c0_i32_0 = arith.constant 0 : i32
    %c0_i32_1 = arith.constant 0 : i32
    return %arg0, %c0_i32, %c0_i32_0 : i32, i32, i32
  }
  func.func @transform_2(%arg0: i32, %arg1: i32) -> (i32, i32, i32, i32) {
    %c0_i32 = arith.constant 0 : i32
    %c0_i32_0 = arith.constant 0 : i32
    %c0_i32_1 = arith.constant 0 : i32
    return %arg0, %c0_i32, %c0_i32_0, %arg1 : i32, i32, i32, i32
  }
  func.func @transform_3(%arg0: i32, %arg1: i32) -> (i32, i32, i32, i32) {
    %c0_i32 = arith.constant 0 : i32
    %c0_i32_0 = arith.constant 0 : i32
    %c0_i32_1 = arith.constant 0 : i32
    return %arg0, %c0_i32, %c0_i32_0, %arg1 : i32, i32, i32, i32
  }
  func.func @transform_4(%arg0: i32, %arg1: i32) -> (i32, i32, i32) {
    %c0_i32 = arith.constant 0 : i32
    %c0_i32_0 = arith.constant 0 : i32
    %c0_i32_1 = arith.constant 0 : i32
    return %arg0, %c0_i32, %c0_i32_0 : i32, i32, i32
  }
}

</mosaic_0001>

<llo_original>
// kernel: tpu_custom_call.1
$region0: #{tpu_custom_call.1}
  #allocation0 [shape = 'u32[]', space=smem, size = 0x4, offset = 0x4, fixed_abs, tag = 'smem constant byte address 0x4 - core index']
  #allocation1 [shape = 'u32[72,128]{1,0:T(1,128)}', space=vmem, size = 0x9000, scoped, tag = 'internal scratch']
  #allocation2 [shape = 'f32[8,1]{1,0:T(8,128)}', space=vmem, size = 0x1000, scoped, tag = 'scratch operand']
  %s0 = inlined_call_operand.hbm [shape: f32[4,32], index: 0, kind: input, shape index: {}]
  %s1 = inlined_call_operand.hbm [shape: f32[2,8,32], index: 1, kind: input, shape index: {}]
  %s2 = inlined_call_operand.hbm [shape: f32[2,8,32,256], index: 2, kind: input, shape index: {}]
  %s3 = inlined_call_operand.hbm [shape: f32[2,8,32,256], index: 3, kind: output, shape index: {0}]
  %s4 = inlined_call_operand.vmem [shape: f32[2,8,1], index: 4, kind: output, shape index: {1}]
  %5 = xla_tuple %s3, %s4
  %s6 = sld [smem:[#allocation0]]
  $region73: #{tpu_custom_call.1} parent=0
    _
  %s8 = ssub.s32 1, %s6
  %s9 = scalar_select 0, %s8, %s6
  $region1: #{tpu_custom_call.1} parent=0
    #allocation3 [shape = 'u8[2048]{0}', space=vmem, size = 0x800, scoped, tag = 'input window, operand 0, single buffered']
    #allocation4 [shape = 's32[2]{0}', space=sflag, size = 0x8, scoped, tag = 'scoped memory for tpu_custom_call.1']
    #allocation5 [shape = 's32[2]{0}', space=sflag, size = 0x8, scoped, tag = 'scoped memory for tpu_custom_call.1']
    #allocation6 [shape = 'u8[8192]{0}', space=vmem, size = 0x2000, scoped, tag = 'input window, operand 1']
    #allocation7 [shape = 's32[2]{0}', space=sflag, size = 0x8, scoped, tag = 'scoped memory for tpu_custom_call.1']
    #allocation8 [shape = 'u8[524288]{0}', space=vmem, size = 0x80000, scoped, tag = 'input window, operand 2']
    #allocation9 [shape = 'u8[524288]{0}', space=vmem, size = 0x80000, scoped, tag = 'output window, operand 0']
    %10 = vsyncpa [#allocation4], 0
    %11 = vsyncpa [#allocation7], 0
    %s12 = scalar_lea.sflag [#allocation7], 1
    %13 = vsyncpa %s12, 0
    %14 = vsyncpa [#allocation5], 0
    %s15 = scalar_lea.sflag [#allocation5], 1
    %16 = vsyncpa %s15, 0
    loop: start=0, step=1, limit=4
    $region2: #{tpu_custom_call.1} parent=1 // loop_pre_header
      _
    $region3: #{tpu_custom_call.1} parent=1 // loop_header
      %s18 = sphi 0, %s22
      %p19 = scmp.ge.s32.totalorder %s18, 4
      %s25 = sphi 0, %s37
      %s26 = sphi 0, %s33
      %s27 = sphi 0, %s25
      %s28 = sphi 0, %s26
      %s29 = sphi 0, %s27
      %s30 = sphi 0, %s28
      %s38 = sphi 0, %s38
      %s40 = sphi 0, %s38
      %s41 = sphi 0, %s40
      %s55 = sphi 0, %s41
      %s61 = sphi 0, %s63
      %s64 = sphi 0, %s61
      %s65 = sphi 0, %s64
      %s81 = sphi 0, %s65
      %s89 = sphi 0, %s91
      %s92 = sphi 0, %s89
      %s93 = sphi 0, %s92
      %s109 = sphi 0, %s93
      %s117 = sphi 0, %s119
      %s120 = sphi 0, %s117
      %s121 = sphi 0, %s120
      %s137 = sphi 0, %s121
      %s143 = sphi 0, %s145
      %s146 = sphi 0, %s143
      %s147 = sphi 0, %s146
      %s163 = sphi 0, %s147
    $region4: #{tpu_custom_call.1} parent=1 // loop_header_branch
      %21 = sbr.rel (%p19) target = $region8
    $region5: #{tpu_custom_call.1} parent=1 // loop_body
      %s23 = ssub.s32 %s18, 1
      %s24 = ssub.s32 %s18, 2
      %s31 = sadd.s32 1, %s26
      %p32 = scmp.ge.s32.totalorder %s31, 1
      %s33 = scalar_select %p32, 0, %s31
      %s34 = sadd.s32 1, %s25
      %s35 = scalar_select %p32, %s34, %s25
      %p36 = scmp.ge.s32.totalorder %s35, 2
      %s37 = scalar_select %p36, 0, %s35
      %s39 = sadd.s32 %s38, 1
      %p42 = scmp.eq.s32.totalorder %s18, 1
      %p43 = scmp.ne.s32.totalorder %s38, %s40
      %p44 = scmp.eq.s32.totalorder %s18, 0
      %p45 = por %p43, %p44
      %p46 = scmp.ne.s32.totalorder %s38, %s40
      %p47 = scmp.eq.s32.totalorder %s23, 1
      %p48 = por %p46, %p47
      %p49 = scmp.ne.s32.totalorder %s40, %s41
      %p50 = scmp.eq.s32.totalorder %s23, 0
      %p51 = por %p49, %p50
      %p52 = scmp.ne.s32.totalorder %s40, %s41
      %p53 = scmp.eq.s32.totalorder %s24, 1
      %p54 = por %p52, %p53
      %p56 = scmp.ne.s32.totalorder %s41, %s55
      %p57 = scmp.eq.s32.totalorder %s24, 0
      %p58 = por %p56, %p57
      %s59 = ssub.s32 %s25, %s37
      %p60 = scmp.eq.s32.totalorder %s59, 0
      %s62 = sadd.s32 %s61, 1
      %s63 = scalar_select %p60, %s61, %s62
      %p66 = pneg %p60
      %p67 = scmp.eq.s32.totalorder %s18, 1
      %p68 = por %p66, %p67
      %p69 = scmp.ne.s32.totalorder %s61, %s64
      %p70 = scmp.eq.s32.totalorder %s18, 0
      %p71 = por %p69, %p70
      %p72 = scmp.ne.s32.totalorder %s61, %s64
      %p73 = scmp.eq.s32.totalorder %s23, 1
      %p74 = por %p72, %p73
      %p75 = scmp.ne.s32.totalorder %s64, %s65
      %p76 = scmp.eq.s32.totalorder %s23, 0
      %p77 = por %p75, %p76
      %p78 = scmp.ne.s32.totalorder %s64, %s65
      %p79 = scmp.eq.s32.totalorder %s24, 1
      %p80 = por %p78, %p79
      %p82 = scmp.ne.s32.totalorder %s65, %s81
      %p83 = scmp.eq.s32.totalorder %s24, 0
      %p84 = por %p82, %p83
      %s85 = ssub.s32 %s25, %s37
      %s86 = ssub.s32 %s26, %s33
      %s87 = sor.u32 %s85, %s86
      %p88 = scmp.eq.s32.totalorder %s87, 0
      %s90 = sadd.s32 %s89, 1
      %s91 = scalar_select %p88, %s89, %s90
      %p94 = pneg %p88
      %p95 = scmp.eq.s32.totalorder %s18, 1
      %p96 = por %p94, %p95
      %p97 = scmp.ne.s32.totalorder %s89, %s92
      %p98 = scmp.eq.s32.totalorder %s18, 0
      %p99 = por %p97, %p98
      %p100 = scmp.ne.s32.totalorder %s89, %s92
      %p101 = scmp.eq.s32.totalorder %s23, 1
      %p102 = por %p100, %p101
      %p103 = scmp.ne.s32.totalorder %s92, %s93
      %p104 = scmp.eq.s32.totalorder %s23, 0
      %p105 = por %p103, %p104
      %p106 = scmp.ne.s32.totalorder %s92, %s93
      %p107 = scmp.eq.s32.totalorder %s24, 1
      %p108 = por %p106, %p107
      %p110 = scmp.ne.s32.totalorder %s93, %s109
      %p111 = scmp.eq.s32.totalorder %s24, 0
      %p112 = por %p110, %p111
      %s113 = ssub.s32 %s25, %s37
      %s114 = ssub.s32 %s26, %s33
      %s115 = sor.u32 %s113, %s114
      %p116 = scmp.eq.s32.totalorder %s115, 0
      %s118 = sadd.s32 %s117, 1
      %s119 = scalar_select %p116, %s117, %s118
      %p122 = pneg %p116
      %p123 = scmp.eq.s32.totalorder %s18, 1
      %p124 = por %p122, %p123
      %p125 = scmp.ne.s32.totalorder %s117, %s120
      %p126 = scmp.eq.s32.totalorder %s18, 0
      %p127 = por %p125, %p126
      %p128 = scmp.ne.s32.totalorder %s117, %s120
      %p129 = scmp.eq.s32.totalorder %s23, 1
      %p130 = por %p128, %p129
      %p131 = scmp.ne.s32.totalorder %s120, %s121
      %p132 = scmp.eq.s32.totalorder %s23, 0
      %p133 = por %p131, %p132
      %p134 = scmp.ne.s32.totalorder %s120, %s121
      %p135 = scmp.eq.s32.totalorder %s24, 1
      %p136 = por %p134, %p135
      %p138 = scmp.ne.s32.totalorder %s121, %s137
      %p139 = scmp.eq.s32.totalorder %s24, 0
      %p140 = por %p138, %p139
      %s141 = ssub.s32 %s25, %s37
      %p142 = scmp.eq.s32.totalorder %s141, 0
      %s144 = sadd.s32 %s143, 1
      %s145 = scalar_select %p142, %s143, %s144
      %p148 = pneg %p142
      %p149 = scmp.eq.s32.totalorder %s18, 1
      %p150 = por %p148, %p149
      %p151 = scmp.ne.s32.totalorder %s143, %s146
      %p152 = scmp.eq.s32.totalorder %s18, 0
      %p153 = por %p151, %p152
      %p154 = scmp.ne.s32.totalorder %s143, %s146
      %p155 = scmp.eq.s32.totalorder %s23, 1
      %p156 = por %p154, %p155
      %p157 = scmp.ne.s32.totalorder %s146, %s147
      %p158 = scmp.eq.s32.totalorder %s23, 0
      %p159 = por %p157, %p158
      %p160 = scmp.ne.s32.totalorder %s146, %s147
      %p161 = scmp.eq.s32.totalorder %s24, 1
      %p162 = por %p160, %p161
      %p164 = scmp.ne.s32.totalorder %s147, %s163
      %p165 = scmp.eq.s32.totalorder %s24, 0
      %p166 = por %p164, %p165
      %p167 = scmp.le.s32.totalorder 1, %s18
      %p168 = scmp.lt.s32.totalorder %s18, 3
      %p169 = pnand %p167, %p168
      %p170 = pneg %p169
      // Predicated region
      $region9: #{tpu_custom_call.1} parent=5 // pred_check
        _
      $region10: #{tpu_custom_call.1} parent=5 // pred_check_branch
        %172 = sbr.rel (%p169) target = $region12
      $region11: #{tpu_custom_call.1} parent=5 // pred_region
        %s173 = ssub.s32 %s18, 1
        // Predicated region
        $region13: #{tpu_custom_call.1} parent=11 // pred_check
          %p174 = pneg %p51
        $region14: #{tpu_custom_call.1} parent=11 // pred_check_branch
          %176 = sbr.rel (%p174) target = $region16
        $region15: #{tpu_custom_call.1} parent=11 // pred_region
          %178 = vsyncadd [#allocation4], 0
          %s180 = sshll.u32 %s0, 4
          %s181 = int_to_ptr.hbm [resolvable:$true] %s180
          %s182 = sshll.u32 [#allocation3], 4
          %s183 = int_to_ptr.vmem [resolvable:$true] %s182
          %185 = dma.hbm_to_vmem [thread:$0]  %s181, 64, %s183, [#allocation4]
        $region16: #{tpu_custom_call.1} parent=11 // pred_fallthru
          _
      $region12: #{tpu_custom_call.1} parent=5 // pred_fallthru
        _
      %p186 = scmp.lt.s32.totalorder %s18, 2
      // Predicated region
      $region17: #{tpu_custom_call.1} parent=5 // pred_check
        %p187 = pneg %p186
      $region18: #{tpu_custom_call.1} parent=5 // pred_check_branch
        %189 = sbr.rel (%p187) target = $region20
      $region19: #{tpu_custom_call.1} parent=5 // pred_region
        // Predicated region
        $region21: #{tpu_custom_call.1} parent=19 // pred_check
          %p190 = pneg %p71
        $region22: #{tpu_custom_call.1} parent=19 // pred_check_branch
          %192 = sbr.rel (%p190) target = $region24
        $region23: #{tpu_custom_call.1} parent=19 // pred_region
          %s193 = sand.u32 %s18, 1
          %s194 = scalar_lea.sflag [#allocation7], %s193
          %s195 = sand.u32 %s61, 1
          %s196 = smul.addr %s195, 8
          %s197 = scalar_lea.vmem [#allocation6], %s196
          %199 = vsyncadd %s194, 0
          %s200 = smul.addr %s25, 8
          %s201 = scalar_lea.hbm %s1, %s200
          %s203 = sshll.u32 %s201, 4
          %s204 = int_to_ptr.hbm [resolvable:$true] %s203
          %s205 = sshll.u32 %s197, 4
          %s206 = int_to_ptr.vmem [resolvable:$true] %s205
          %208 = dma.hbm_to_vmem [thread:$0]  %s204, 128, %s206, %s194
        $region24: #{tpu_custom_call.1} parent=19 // pred_fallthru
          _
        // Predicated region
        $region25: #{tpu_custom_call.1} parent=19 // pred_check
          %p209 = pneg %p99
        $region26: #{tpu_custom_call.1} parent=19 // pred_check_branch
          %211 = sbr.rel (%p209) target = $region28
        $region27: #{tpu_custom_call.1} parent=19 // pred_region
          %s212 = sand.u32 %s18, 1
          %s213 = scalar_lea.sflag [#allocation7], %s212
          %s214 = sand.u32 %s89, 1
          %s215 = smul.addr %s214, 512
          %s216 = scalar_lea.vmem [#allocation8], %s215
          %s217 = smul.u32 2, %s26
          %219 = vsyncadd %s213, 0
          %s220 = smul.addr %s25, 64
          %s221 = sadd.s32 %s217, %s220
          %s222 = smul.addr %s221, 8
          %s223 = scalar_lea.hbm %s2, %s222
          %s224 = sshll.u32 %s223, 4
          %s225 = int_to_ptr.hbm [resolvable:$true] %s224
          %s226 = sshll.u32 %s216, 4
          %s227 = int_to_ptr.vmem [resolvable:$true] %s226
          %232 = dma.hbm_to_vmem [thread:$0]  %s225, 8192, %s227, %s213, 256, 256, 16
        $region28: #{tpu_custom_call.1} parent=19 // pred_fallthru
          _
      $region20: #{tpu_custom_call.1} parent=5 // pred_fallthru
        _
      %p233 = scmp.le.s32.totalorder 1, %s18
      %p234 = scmp.lt.s32.totalorder %s18, 3
      %p235 = pnand %p233, %p234
      %p236 = pneg %p235
      // Predicated region
      $region29: #{tpu_custom_call.1} parent=5 // pred_check
        _
      $region30: #{tpu_custom_call.1} parent=5 // pred_check_branch
        %238 = sbr.rel (%p235) target = $region32
      $region31: #{tpu_custom_call.1} parent=5 // pred_region
        %s239 = ssub.s32 %s18, 1
        // Predicated region
        $region33: #{tpu_custom_call.1} parent=31 // pred_check
          %p240 = pneg %p51
        $region34: #{tpu_custom_call.1} parent=31 // pred_check_branch
          %242 = sbr.rel (%p240) target = $region36
        $region35: #{tpu_custom_call.1} parent=31 // pred_region
          %244 = dma.done [#allocation4], 64
        $region36: #{tpu_custom_call.1} parent=31 // pred_fallthru
          _
        %s245 = sand.u32 %s23, 1
        %s246 = scalar_lea.sflag [#allocation7], %s245
        %s247 = sand.u32 %s64, 1
        %s248 = smul.addr %s247, 8
        %s249 = scalar_lea.vmem [#allocation6], %s248
        // Predicated region
        $region37: #{tpu_custom_call.1} parent=31 // pred_check
          %p250 = pneg %p77
        $region38: #{tpu_custom_call.1} parent=31 // pred_check_branch
          %252 = sbr.rel (%p250) target = $region40
        $region39: #{tpu_custom_call.1} parent=31 // pred_region
          %254 = dma.done %s246, 128
        $region40: #{tpu_custom_call.1} parent=31 // pred_fallthru
          _
        %s255 = sand.u32 %s23, 1
        %s256 = scalar_lea.sflag [#allocation7], %s255
        %s257 = sand.u32 %s92, 1
        %s258 = smul.addr %s257, 512
        %s259 = scalar_lea.vmem [#allocation8], %s258
        // Predicated region
        $region41: #{tpu_custom_call.1} parent=31 // pred_check
          %p260 = pneg %p105
        $region42: #{tpu_custom_call.1} parent=31 // pred_check_branch
          %262 = sbr.rel (%p260) target = $region44
        $region43: #{tpu_custom_call.1} parent=31 // pred_region
          %264 = dma.done %s256, 8192
        $region44: #{tpu_custom_call.1} parent=31 // pred_fallthru
          _
        %p265 = pneg %p51
        %p266 = pneg %p48
        %s267 = sand.u32 %s23, 1
        %s268 = scalar_lea.sflag [#allocation7], %s267
        %s269 = sand.u32 %s64, 1
        %s270 = smul.addr %s269, 8
        %s271 = scalar_lea.vmem [#allocation6], %s270
        %p272 = pneg %p77
        %p273 = pneg %p74
        %s274 = sand.u32 %s23, 1
        %s275 = scalar_lea.sflag [#allocation7], %s274
        %s276 = sand.u32 %s92, 1
        %s277 = smul.addr %s276, 512
        %s278 = scalar_lea.vmem [#allocation8], %s277
        %p279 = pneg %p105
        %p280 = pneg %p102
        %p281 = pneg %p133
        %p282 = pneg %p130
        %s283 = sand.u32 %s120, 1
        %s284 = scalar_lea.sflag [#allocation5], %s283
        %s285 = sand.u32 %s120, 1
        %s286 = smul.addr %s285, 512
        %s287 = scalar_lea.vmem [#allocation9], %s286
        %p288 = pneg %p159
        %p289 = pneg %p156
        %p290 = scmp.lt.s32.totalorder %s27, 1
        %s291 = scalar_select %p290, %s27, 1
        %s292 = smul.addr %s291, 8
        %s293 = scalar_lea.vmem %s4, %s292
        %s294 = smul.u32 2, %s28
        %s295 = smul.u32 2, %s28
        %p296 = scmp.lt.s32.totalorder %s27, 1
        %s297 = scalar_select %p296, %s27, 1
        %s298 = smul.addr %s297, 8
        %s299 = scalar_lea.vmem %s4, %s298
        %p300 = scmp.eq.s32.totalorder %s28, 0
        // Predicated region
        $region45: #{tpu_custom_call.1} parent=31 // pred_check
          %p301 = pneg %p300
        $region46: #{tpu_custom_call.1} parent=31 // pred_check_branch
          %303 = sbr.rel (%p301) target = $region48
        $region47: #{tpu_custom_call.1} parent=31 // pred_region
          %vm304 = vcmask 7168
          %305 = vst.msk [vmem:[#allocation2] sm:$0xff] %vm304, 0.0
        $region48: #{tpu_custom_call.1} parent=31 // pred_fallthru
          _
        %v306 = vld [vmem:[%s259] sm:$0xff]
        %v307 = vld [vmem:[%s259 + $0x8] sm:$0xff]
        %v308 = vld [vmem:[%s259 + $0x10] sm:$0xff]
        %v309 = vld [vmem:[%s259 + $0x18] sm:$0xff]
        %v310 = vld [vmem:[%s259 + $0x20] sm:$0xff]
        %v311 = vld [vmem:[%s259 + $0x28] sm:$0xff]
        %v312 = vld [vmem:[%s259 + $0x30] sm:$0xff]
        %v313 = vld [vmem:[%s259 + $0x38] sm:$0xff]
        %v314 = vld [vmem:[%s259 + $0x40] sm:$0xff]
        %v315 = vld [vmem:[%s259 + $0x48] sm:$0xff]
        %v316 = vld [vmem:[%s259 + $0x50] sm:$0xff]
        %v317 = vld [vmem:[%s259 + $0x58] sm:$0xff]
        %v318 = vld [vmem:[%s259 + $0x60] sm:$0xff]
        %v319 = vld [vmem:[%s259 + $0x68] sm:$0xff]
        %v320 = vld [vmem:[%s259 + $0x70] sm:$0xff]
        %v321 = vld [vmem:[%s259 + $0x78] sm:$0xff]
        %v322 = vld [vmem:[%s259 + $0x80] sm:$0xff]
        %v323 = vld [vmem:[%s259 + $0x88] sm:$0xff]
        %v324 = vld [vmem:[%s259 + $0x90] sm:$0xff]
        %v325 = vld [vmem:[%s259 + $0x98] sm:$0xff]
        %v326 = vld [vmem:[%s259 + $0xa0] sm:$0xff]
        %v327 = vld [vmem:[%s259 + $0xa8] sm:$0xff]
        %v328 = vld [vmem:[%s259 + $0xb0] sm:$0xff]
        %v329 = vld [vmem:[%s259 + $0xb8] sm:$0xff]
        %v330 = vld [vmem:[%s259 + $0xc0] sm:$0xff]
        %v331 = vld [vmem:[%s259 + $0xc8] sm:$0xff]
        %v332 = vld [vmem:[%s259 + $0xd0] sm:$0xff]
        %v333 = vld [vmem:[%s259 + $0xd8] sm:$0xff]
        %v334 = vld [vmem:[%s259 + $0xe0] sm:$0xff]
        %v335 = vld [vmem:[%s259 + $0xe8] sm:$0xff]
        %v336 = vld [vmem:[%s259 + $0xf0] sm:$0xff]
        %v337 = vld [vmem:[%s259 + $0xf8] sm:$0xff]
        %v338 = vld [vmem:[%s259 + $0x100] sm:$0xff]
        %v339 = vld [vmem:[%s259 + $0x108] sm:$0xff]
        %v340 = vld [vmem:[%s259 + $0x110] sm:$0xff]
        %v341 = vld [vmem:[%s259 + $0x118] sm:$0xff]
        %v342 = vld [vmem:[%s259 + $0x120] sm:$0xff]
        %v343 = vld [vmem:[%s259 + $0x128] sm:$0xff]
        %v344 = vld [vmem:[%s259 + $0x130] sm:$0xff]
        %v345 = vld [vmem:[%s259 + $0x138] sm:$0xff]
        %v346 = vld [vmem:[%s259 + $0x140] sm:$0xff]
        %v347 = vld [vmem:[%s259 + $0x148] sm:$0xff]
        %v348 = vld [vmem:[%s259 + $0x150] sm:$0xff]
        %v349 = vld [vmem:[%s259 + $0x158] sm:$0xff]
        %v350 = vld [vmem:[%s259 + $0x160] sm:$0xff]
        %v351 = vld [vmem:[%s259 + $0x168] sm:$0xff]
        %v352 = vld [vmem:[%s259 + $0x170] sm:$0xff]
        %v353 = vld [vmem:[%s259 + $0x178] sm:$0xff]
        %v354 = vld [vmem:[%s259 + $0x180] sm:$0xff]
        %v355 = vld [vmem:[%s259 + $0x188] sm:$0xff]
        %v356 = vld [vmem:[%s259 + $0x190] sm:$0xff]
        %v357 = vld [vmem:[%s259 + $0x198] sm:$0xff]
        %v358 = vld [vmem:[%s259 + $0x1a0] sm:$0xff]
        %v359 = vld [vmem:[%s259 + $0x1a8] sm:$0xff]
        %v360 = vld [vmem:[%s259 + $0x1b0] sm:$0xff]
        %v361 = vld [vmem:[%s259 + $0x1b8] sm:$0xff]
        %v362 = vld [vmem:[%s259 + $0x1c0] sm:$0xff]
        %v363 = vld [vmem:[%s259 + $0x1c8] sm:$0xff]
        %v364 = vld [vmem:[%s259 + $0x1d0] sm:$0xff]
        %v365 = vld [vmem:[%s259 + $0x1d8] sm:$0xff]
        %v366 = vld [vmem:[%s259 + $0x1e0] sm:$0xff]
        %v367 = vld [vmem:[%s259 + $0x1e8] sm:$0xff]
        %v368 = vld [vmem:[%s259 + $0x1f0] sm:$0xff]
        %v369 = vld [vmem:[%s259 + $0x1f8] sm:$0xff]
        %v370 = vld [vmem:[%s249] sm:$0xff]
        %v371 = vperm.slane %v370, 0
        %v372 = vlaneseq
        %v373 = vshrl.u32 %v372, 7
        %375 = vset.pattern.permute.xlu0 %v373
        %376 = vperm.xlu0 %375, %v371
        %v377 = vpop.permute.xlu0 %376
        %v378 = vlaneseq
        %v379 = vshrl.u32 %v378, 7
        %v380 = vadd.s32 %v379, 8
        %381 = vset.pattern.permute.xlu0 %v380
        %382 = vperm.xlu0 %381, %v371
        %v383 = vpop.permute.xlu0 %382
        %v384 = vlaneseq
        %v385 = vshrl.u32 %v384, 7
        %v386 = vadd.s32 %v385, 16
        %387 = vset.pattern.permute.xlu0 %v386
        %388 = vperm.xlu0 %387, %v371
        %v389 = vpop.permute.xlu0 %388
        %v390 = vlaneseq
        %v391 = vshrl.u32 %v390, 7
        %v392 = vadd.s32 %v391, 24
        %393 = vset.pattern.permute.xlu0 %v392
        %394 = vperm.xlu0 %393, %v371
        %v395 = vpop.permute.xlu0 %394
        %v396 = vperm.slane %v370, 1
        %v397 = vlaneseq
        %v398 = vshrl.u32 %v397, 7
        %400 = vset.pattern.permute.xlu0 %v398
        %401 = vperm.xlu0 %400, %v396
        %v402 = vpop.permute.xlu0 %401
        %v403 = vlaneseq
        %v404 = vshrl.u32 %v403, 7
        %v405 = vadd.s32 %v404, 8
        %406 = vset.pattern.permute.xlu0 %v405
        %407 = vperm.xlu0 %406, %v396
        %v408 = vpop.permute.xlu0 %407
        %v409 = vlaneseq
        %v410 = vshrl.u32 %v409, 7
        %v411 = vadd.s32 %v410, 16
        %412 = vset.pattern.permute.xlu0 %v411
        %413 = vperm.xlu0 %412, %v396
        %v414 = vpop.permute.xlu0 %413
        %v415 = vlaneseq
        %v416 = vshrl.u32 %v415, 7
        %v417 = vadd.s32 %v416, 24
        %418 = vset.pattern.permute.xlu0 %v417
        %419 = vperm.xlu0 %418, %v396
        %v420 = vpop.permute.xlu0 %419
        %v421 = vperm.slane %v370, 2
        %v422 = vlaneseq
        %v423 = vshrl.u32 %v422, 7
        %425 = vset.pattern.permute.xlu0 %v423
        %426 = vperm.xlu0 %425, %v421
        %v427 = vpop.permute.xlu0 %426
        %v428 = vlaneseq
        %v429 = vshrl.u32 %v428, 7
        %v430 = vadd.s32 %v429, 8
        %431 = vset.pattern.permute.xlu0 %v430
        %432 = vperm.xlu0 %431, %v421
        %v433 = vpop.permute.xlu0 %432
        %v434 = vlaneseq
        %v435 = vshrl.u32 %v434, 7
        %v436 = vadd.s32 %v435, 16
        %437 = vset.pattern.permute.xlu0 %v436
        %438 = vperm.xlu0 %437, %v421
        %v439 = vpop.permute.xlu0 %438
        %v440 = vlaneseq
        %v441 = vshrl.u32 %v440, 7
        %v442 = vadd.s32 %v441, 24
        %443 = vset.pattern.permute.xlu0 %v442
        %444 = vperm.xlu0 %443, %v421
        %v445 = vpop.permute.xlu0 %444
        %v446 = vperm.slane %v370, 3
        %v447 = vlaneseq
        %v448 = vshrl.u32 %v447, 7
        %450 = vset.pattern.permute.xlu0 %v448
        %451 = vperm.xlu0 %450, %v446
        %v452 = vpop.permute.xlu0 %451
        %v453 = vlaneseq
        %v454 = vshrl.u32 %v453, 7
        %v455 = vadd.s32 %v454, 8
        %456 = vset.pattern.permute.xlu0 %v455
        %457 = vperm.xlu0 %456, %v446
        %v458 = vpop.permute.xlu0 %457
        %v459 = vlaneseq
        %v460 = vshrl.u32 %v459, 7
        %v461 = vadd.s32 %v460, 16
        %462 = vset.pattern.permute.xlu0 %v461
        %463 = vperm.xlu0 %462, %v446
        %v464 = vpop.permute.xlu0 %463
        %v465 = vlaneseq
        %v466 = vshrl.u32 %v465, 7
        %v467 = vadd.s32 %v466, 24
        %468 = vset.pattern.permute.xlu0 %v467
        %469 = vperm.xlu0 %468, %v446
        %v470 = vpop.permute.xlu0 %469
        %v471 = vperm.slane %v370, 4
        %v472 = vlaneseq
        %v473 = vshrl.u32 %v472, 7
        %475 = vset.pattern.permute.xlu0 %v473
        %476 = vperm.xlu0 %475, %v471
        %v477 = vpop.permute.xlu0 %476
        %v478 = vlaneseq
        %v479 = vshrl.u32 %v478, 7
        %v480 = vadd.s32 %v479, 8
        %481 = vset.pattern.permute.xlu0 %v480
        %482 = vperm.xlu0 %481, %v471
        %v483 = vpop.permute.xlu0 %482
        %v484 = vlaneseq
        %v485 = vshrl.u32 %v484, 7
        %v486 = vadd.s32 %v485, 16
        %487 = vset.pattern.permute.xlu0 %v486
        %488 = vperm.xlu0 %487, %v471
        %v489 = vpop.permute.xlu0 %488
        %v490 = vlaneseq
        %v491 = vshrl.u32 %v490, 7
        %v492 = vadd.s32 %v491, 24
        %493 = vset.pattern.permute.xlu0 %v492
        %494 = vperm.xlu0 %493, %v471
        %v495 = vpop.permute.xlu0 %494
        %v496 = vperm.slane %v370, 5
        %v497 = vlaneseq
        %v498 = vshrl.u32 %v497, 7
        %500 = vset.pattern.permute.xlu0 %v498
        %501 = vperm.xlu0 %500, %v496
        %v502 = vpop.permute.xlu0 %501
        %v503 = vlaneseq
        %v504 = vshrl.u32 %v503, 7
        %v505 = vadd.s32 %v504, 8
        %506 = vset.pattern.permute.xlu0 %v505
        %507 = vperm.xlu0 %506, %v496
        %v508 = vpop.permute.xlu0 %507
        %v509 = vlaneseq
        %v510 = vshrl.u32 %v509, 7
        %v511 = vadd.s32 %v510, 16
        %512 = vset.pattern.permute.xlu0 %v511
        %513 = vperm.xlu0 %512, %v496
        %v514 = vpop.permute.xlu0 %513
        %v515 = vlaneseq
        %v516 = vshrl.u32 %v515, 7
        %v517 = vadd.s32 %v516, 24
        %518 = vset.pattern.permute.xlu0 %v517
        %519 = vperm.xlu0 %518, %v496
        %v520 = vpop.permute.xlu0 %519
        %v521 = vperm.slane %v370, 6
        %v522 = vlaneseq
        %v523 = vshrl.u32 %v522, 7
        %525 = vset.pattern.permute.xlu0 %v523
        %526 = vperm.xlu0 %525, %v521
        %v527 = vpop.permute.xlu0 %526
        %v528 = vlaneseq
        %v529 = vshrl.u32 %v528, 7
        %v530 = vadd.s32 %v529, 8
        %531 = vset.pattern.permute.xlu0 %v530
        %532 = vperm.xlu0 %531, %v521
        %v533 = vpop.permute.xlu0 %532
        %v534 = vlaneseq
        %v535 = vshrl.u32 %v534, 7
        %v536 = vadd.s32 %v535, 16
        %537 = vset.pattern.permute.xlu0 %v536
        %538 = vperm.xlu0 %537, %v521
        %v539 = vpop.permute.xlu0 %538
        %v540 = vlaneseq
        %v541 = vshrl.u32 %v540, 7
        %v542 = vadd.s32 %v541, 24
        %543 = vset.pattern.permute.xlu0 %v542
        %544 = vperm.xlu0 %543, %v521
        %v545 = vpop.permute.xlu0 %544
        %v546 = vperm.slane %v370, 7
        %v547 = vlaneseq
        %v548 = vshrl.u32 %v547, 7
        %550 = vset.pattern.permute.xlu0 %v548
        %551 = vperm.xlu0 %550, %v546
        %v552 = vpop.permute.xlu0 %551
        %v553 = vlaneseq
        %v554 = vshrl.u32 %v553, 7
        %v555 = vadd.s32 %v554, 8
        %556 = vset.pattern.permute.xlu0 %v555
        %557 = vperm.xlu0 %556, %v546
        %v558 = vpop.permute.xlu0 %557
        %v559 = vlaneseq
        %v560 = vshrl.u32 %v559, 7
        %v561 = vadd.s32 %v560, 16
        %562 = vset.pattern.permute.xlu0 %v561
        %563 = vperm.xlu0 %562, %v546
        %v564 = vpop.permute.xlu0 %563
        %v565 = vlaneseq
        %v566 = vshrl.u32 %v565, 7
        %v567 = vadd.s32 %v566, 24
        %568 = vset.pattern.permute.xlu0 %v567
        %569 = vperm.xlu0 %568, %v546
        %v570 = vpop.permute.xlu0 %569
        %v571 = vadd.f32 %v306, %v377
        %v572 = vadd.f32 %v307, %v377
        %v573 = vadd.f32 %v308, %v383
        %v574 = vadd.f32 %v309, %v383
        %v575 = vadd.f32 %v310, %v389
        %v576 = vadd.f32 %v311, %v389
        %v577 = vadd.f32 %v312, %v395
        %v578 = vadd.f32 %v313, %v395
        %v579 = vadd.f32 %v314, %v402
        %v580 = vadd.f32 %v315, %v402
        %v581 = vadd.f32 %v316, %v408
        %v582 = vadd.f32 %v317, %v408
        %v583 = vadd.f32 %v318, %v414
        %v584 = vadd.f32 %v319, %v414
        %v585 = vadd.f32 %v320, %v420
        %v586 = vadd.f32 %v321, %v420
        %v587 = vadd.f32 %v322, %v427
        %v588 = vadd.f32 %v323, %v427
        %v589 = vadd.f32 %v324, %v433
        %v590 = vadd.f32 %v325, %v433
        %v591 = vadd.f32 %v326, %v439
        %v592 = vadd.f32 %v327, %v439
        %v593 = vadd.f32 %v328, %v445
        %v594 = vadd.f32 %v329, %v445
        %v595 = vadd.f32 %v330, %v452
        %v596 = vadd.f32 %v331, %v452
        %v597 = vadd.f32 %v332, %v458
        %v598 = vadd.f32 %v333, %v458
        %v599 = vadd.f32 %v334, %v464
        %v600 = vadd.f32 %v335, %v464
        %v601 = vadd.f32 %v336, %v470
        %v602 = vadd.f32 %v337, %v470
        %v603 = vadd.f32 %v338, %v477
        %v604 = vadd.f32 %v339, %v477
        %v605 = vadd.f32 %v340, %v483
        %v606 = vadd.f32 %v341, %v483
        %v607 = vadd.f32 %v342, %v489
        %v608 = vadd.f32 %v343, %v489
        %v609 = vadd.f32 %v344, %v495
        %v610 = vadd.f32 %v345, %v495
        %v611 = vadd.f32 %v346, %v502
        %v612 = vadd.f32 %v347, %v502
        %v613 = vadd.f32 %v348, %v508
        %v614 = vadd.f32 %v349, %v508
        %v615 = vadd.f32 %v350, %v514
        %v616 = vadd.f32 %v351, %v514
        %v617 = vadd.f32 %v352, %v520
        %v618 = vadd.f32 %v353, %v520
        %v619 = vadd.f32 %v354, %v527
        %v620 = vadd.f32 %v355, %v527
        %v621 = vadd.f32 %v356, %v533
        %v622 = vadd.f32 %v357, %v533
        %v623 = vadd.f32 %v358, %v539
        %v624 = vadd.f32 %v359, %v539
        %v625 = vadd.f32 %v360, %v545
        %v626 = vadd.f32 %v361, %v545
        %v627 = vadd.f32 %v362, %v552
        %v628 = vadd.f32 %v363, %v552
        %v629 = vadd.f32 %v364, %v558
        %v630 = vadd.f32 %v365, %v558
        %v631 = vadd.f32 %v366, %v564
        %v632 = vadd.f32 %v367, %v564
        %v633 = vadd.f32 %v368, %v570
        %v634 = vadd.f32 %v369, %v570
        %v635 = vld [vmem:[#allocation3] sm:$0xf]
        %v636 = vperm.slane %v635, 0
        %v637 = vlaneseq
        %v638 = vshrl.u32 %v637, 7
        %640 = vset.pattern.permute.xlu0 %v638
        %641 = vperm.xlu0 %640, %v636
        %v642 = vpop.permute.xlu0 %641
        %v643 = vlaneseq
        %v644 = vshrl.u32 %v643, 7
        %v645 = vadd.s32 %v644, 8
        %646 = vset.pattern.permute.xlu0 %v645
        %647 = vperm.xlu0 %646, %v636
        %v648 = vpop.permute.xlu0 %647
        %v649 = vlaneseq
        %v650 = vshrl.u32 %v649, 7
        %v651 = vadd.s32 %v650, 16
        %652 = vset.pattern.permute.xlu0 %v651
        %653 = vperm.xlu0 %652, %v636
        %v654 = vpop.permute.xlu0 %653
        %v655 = vlaneseq
        %v656 = vshrl.u32 %v655, 7
        %v657 = vadd.s32 %v656, 24
        %658 = vset.pattern.permute.xlu0 %v657
        %659 = vperm.xlu0 %658, %v636
        %v660 = vpop.permute.xlu0 %659
        %v661 = vperm.slane %v635, 1
        %v662 = vlaneseq
        %v663 = vshrl.u32 %v662, 7
        %665 = vset.pattern.permute.xlu0 %v663
        %666 = vperm.xlu0 %665, %v661
        %v667 = vpop.permute.xlu0 %666
        %v668 = vlaneseq
        %v669 = vshrl.u32 %v668, 7
        %v670 = vadd.s32 %v669, 8
        %671 = vset.pattern.permute.xlu0 %v670
        %672 = vperm.xlu0 %671, %v661
        %v673 = vpop.permute.xlu0 %672
        %v674 = vlaneseq
        %v675 = vshrl.u32 %v674, 7
        %v676 = vadd.s32 %v675, 16
        %677 = vset.pattern.permute.xlu0 %v676
        %678 = vperm.xlu0 %677, %v661
        %v679 = vpop.permute.xlu0 %678
        %v680 = vlaneseq
        %v681 = vshrl.u32 %v680, 7
        %v682 = vadd.s32 %v681, 24
        %683 = vset.pattern.permute.xlu0 %v682
        %684 = vperm.xlu0 %683, %v661
        %v685 = vpop.permute.xlu0 %684
        %v686 = vmul.f32 %v571, %v642
        %v687 = vmul.f32 %v572, %v642
        %v688 = vmul.f32 %v573, %v648
        %v689 = vmul.f32 %v574, %v648
        %v690 = vmul.f32 %v575, %v654
        %v691 = vmul.f32 %v576, %v654
        %v692 = vmul.f32 %v577, %v660
        %v693 = vmul.f32 %v578, %v660
        %v694 = vmul.f32 %v579, %v642
        %v695 = vmul.f32 %v580, %v642
        %v696 = vmul.f32 %v581, %v648
        %v697 = vmul.f32 %v582, %v648
        %v698 = vmul.f32 %v583, %v654
        %v699 = vmul.f32 %v584, %v654
        %v700 = vmul.f32 %v585, %v660
        %v701 = vmul.f32 %v586, %v660
        %v702 = vmul.f32 %v587, %v642
        %v703 = vmul.f32 %v588, %v642
        %v704 = vmul.f32 %v589, %v648
        %v705 = vmul.f32 %v590, %v648
        %v706 = vmul.f32 %v591, %v654
        %v707 = vmul.f32 %v592, %v654
        %v708 = vmul.f32 %v593, %v660
        %v709 = vmul.f32 %v594, %v660
        %v710 = vmul.f32 %v595, %v642
        %v711 = vmul.f32 %v596, %v642
        %v712 = vmul.f32 %v597, %v648
        %v713 = vmul.f32 %v598, %v648
        %v714 = vmul.f32 %v599, %v654
        %v715 = vmul.f32 %v600, %v654
        %v716 = vmul.f32 %v601, %v660
        %v717 = vmul.f32 %v602, %v660
        %v718 = vmul.f32 %v603, %v642
        %v719 = vmul.f32 %v604, %v642
        %v720 = vmul.f32 %v605, %v648
        %v721 = vmul.f32 %v606, %v648
        %v722 = vmul.f32 %v607, %v654
        %v723 = vmul.f32 %v608, %v654
        %v724 = vmul.f32 %v609, %v660
        %v725 = vmul.f32 %v610, %v660
        %v726 = vmul.f32 %v611, %v642
        %v727 = vmul.f32 %v612, %v642
        %v728 = vmul.f32 %v613, %v648
        %v729 = vmul.f32 %v614, %v648
        %v730 = vmul.f32 %v615, %v654
        %v731 = vmul.f32 %v616, %v654
        %v732 = vmul.f32 %v617, %v660
        %v733 = vmul.f32 %v618, %v660
        %v734 = vmul.f32 %v619, %v642
        %v735 = vmul.f32 %v620, %v642
        %v736 = vmul.f32 %v621, %v648
        %v737 = vmul.f32 %v622, %v648
        %v738 = vmul.f32 %v623, %v654
        %v739 = vmul.f32 %v624, %v654
        %v740 = vmul.f32 %v625, %v660
        %v741 = vmul.f32 %v626, %v660
        %v742 = vmul.f32 %v627, %v642
        %v743 = vmul.f32 %v628, %v642
        %v744 = vmul.f32 %v629, %v648
        %v745 = vmul.f32 %v630, %v648
        %v746 = vmul.f32 %v631, %v654
        %v747 = vmul.f32 %v632, %v654
        %v748 = vmul.f32 %v633, %v660
        %v749 = vmul.f32 %v634, %v660
        %v750 = vmul.f32 %v571, %v667
        %v751 = vmul.f32 %v572, %v667
        %v752 = vmul.f32 %v573, %v673
        %v753 = vmul.f32 %v574, %v673
        %v754 = vmul.f32 %v575, %v679
        %v755 = vmul.f32 %v576, %v679
        %v756 = vmul.f32 %v577, %v685
        %v757 = vmul.f32 %v578, %v685
        %v758 = vmul.f32 %v579, %v667
        %v759 = vmul.f32 %v580, %v667
        %v760 = vmul.f32 %v581, %v673
        %v761 = vmul.f32 %v582, %v673
        %v762 = vmul.f32 %v583, %v679
        %v763 = vmul.f32 %v584, %v679
        %v764 = vmul.f32 %v585, %v685
        %v765 = vmul.f32 %v586, %v685
        %v766 = vmul.f32 %v587, %v667
        %v767 = vmul.f32 %v588, %v667
        %v768 = vmul.f32 %v589, %v673
        %v769 = vmul.f32 %v590, %v673
        %v770 = vmul.f32 %v591, %v679
        %v771 = vmul.f32 %v592, %v679
        %v772 = vmul.f32 %v593, %v685
        %v773 = vmul.f32 %v594, %v685
        %v774 = vmul.f32 %v595, %v667
        %v775 = vmul.f32 %v596, %v667
        %v776 = vmul.f32 %v597, %v673
        %v777 = vmul.f32 %v598, %v673
        %v778 = vmul.f32 %v599, %v679
        %v779 = vmul.f32 %v600, %v679
        %v780 = vmul.f32 %v601, %v685
        %v781 = vmul.f32 %v602, %v685
        %v782 = vmul.f32 %v603, %v667
        %v783 = vmul.f32 %v604, %v667
        %v784 = vmul.f32 %v605, %v673
        %v785 = vmul.f32 %v606, %v673
        %v786 = vmul.f32 %v607, %v679
        %v787 = vmul.f32 %v608, %v679
        %v788 = vmul.f32 %v609, %v685
        %v789 = vmul.f32 %v610, %v685
        %v790 = vmul.f32 %v611, %v667
        %v791 = vmul.f32 %v612, %v667
        %v792 = vmul.f32 %v613, %v673
        %v793 = vmul.f32 %v614, %v673
        %v794 = vmul.f32 %v615, %v679
        %v795 = vmul.f32 %v616, %v679
        %v796 = vmul.f32 %v617, %v685
        %v797 = vmul.f32 %v618, %v685
        %v798 = vmul.f32 %v619, %v667
        %v799 = vmul.f32 %v620, %v667
        %v800 = vmul.f32 %v621, %v673
        %v801 = vmul.f32 %v622, %v673
        %v802 = vmul.f32 %v623, %v679
        %v803 = vmul.f32 %v624, %v679
        %v804 = vmul.f32 %v625, %v685
        %v805 = vmul.f32 %v626, %v685
        %v806 = vmul.f32 %v627, %v667
        %v807 = vmul.f32 %v628, %v667
        %v808 = vmul.f32 %v629, %v673
        %v809 = vmul.f32 %v630, %v673
        %v810 = vmul.f32 %v631, %v679
        %v811 = vmul.f32 %v632, %v679
        %v812 = vmul.f32 %v633, %v685
        %v813 = vmul.f32 %v634, %v685
        %v814 = vadd.f32 %v686, %v688
        %v815 = vadd.f32 %v814, %v690
        %v816 = vadd.f32 %v815, %v692
        %v817 = vrot.slane %v816, 4
        %v818 = vadd.f32 %v816, %v817
        %v819 = vrot.slane %v818, 2
        %v820 = vadd.f32 %v818, %v819
        %v821 = vrot.slane %v820, 1
        %v822 = vadd.f32 %v820, %v821
        %v823 = vadd.f32 %v687, %v689
        %v824 = vadd.f32 %v823, %v691
        %v825 = vadd.f32 %v824, %v693
        %v826 = vrot.slane %v825, 4
        %v827 = vadd.f32 %v825, %v826
        %v828 = vrot.slane %v827, 2
        %v829 = vadd.f32 %v827, %v828
        %v830 = vrot.slane %v829, 1
        %v831 = vadd.f32 %v829, %v830
        %v832 = vadd.f32 %v694, %v696
        %v833 = vadd.f32 %v832, %v698
        %v834 = vadd.f32 %v833, %v700
        %v835 = vrot.slane %v834, 4
        %v836 = vadd.f32 %v834, %v835
        %v837 = vrot.slane %v836, 2
        %v838 = vadd.f32 %v836, %v837
        %v839 = vrot.slane %v838, 1
        %v840 = vadd.f32 %v838, %v839
        %v841 = vadd.f32 %v695, %v697
        %v842 = vadd.f32 %v841, %v699
        %v843 = vadd.f32 %v842, %v701
        %v844 = vrot.slane %v843, 4
        %v845 = vadd.f32 %v843, %v844
        %v846 = vrot.slane %v845, 2
        %v847 = vadd.f32 %v845, %v846
        %v848 = vrot.slane %v847, 1
        %v849 = vadd.f32 %v847, %v848
        %v850 = vadd.f32 %v702, %v704
        %v851 = vadd.f32 %v850, %v706
        %v852 = vadd.f32 %v851, %v708
        %v853 = vrot.slane %v852, 4
        %v854 = vadd.f32 %v852, %v853
        %v855 = vrot.slane %v854, 2
        %v856 = vadd.f32 %v854, %v855
        %v857 = vrot.slane %v856, 1
        %v858 = vadd.f32 %v856, %v857
        %v859 = vadd.f32 %v703, %v705
        %v860 = vadd.f32 %v859, %v707
        %v861 = vadd.f32 %v860, %v709
        %v862 = vrot.slane %v861, 4
        %v863 = vadd.f32 %v861, %v862
        %v864 = vrot.slane %v863, 2
        %v865 = vadd.f32 %v863, %v864
        %v866 = vrot.slane %v865, 1
        %v867 = vadd.f32 %v865, %v866
        %v868 = vadd.f32 %v710, %v712
        %v869 = vadd.f32 %v868, %v714
        %v870 = vadd.f32 %v869, %v716
        %v871 = vrot.slane %v870, 4
        %v872 = vadd.f32 %v870, %v871
        %v873 = vrot.slane %v872, 2
        %v874 = vadd.f32 %v872, %v873
        %v875 = vrot.slane %v874, 1
        %v876 = vadd.f32 %v874, %v875
        %v877 = vadd.f32 %v711, %v713
        %v878 = vadd.f32 %v877, %v715
        %v879 = vadd.f32 %v878, %v717
        %v880 = vrot.slane %v879, 4
        %v881 = vadd.f32 %v879, %v880
        %v882 = vrot.slane %v881, 2
        %v883 = vadd.f32 %v881, %v882
        %v884 = vrot.slane %v883, 1
        %v885 = vadd.f32 %v883, %v884
        %v886 = vadd.f32 %v718, %v720
        %v887 = vadd.f32 %v886, %v722
        %v888 = vadd.f32 %v887, %v724
        %v889 = vrot.slane %v888, 4
        %v890 = vadd.f32 %v888, %v889
        %v891 = vrot.slane %v890, 2
        %v892 = vadd.f32 %v890, %v891
        %v893 = vrot.slane %v892, 1
        %v894 = vadd.f32 %v892, %v893
        %v895 = vadd.f32 %v719, %v721
        %v896 = vadd.f32 %v895, %v723
        %v897 = vadd.f32 %v896, %v725
        %v898 = vrot.slane %v897, 4
        %v899 = vadd.f32 %v897, %v898
        %v900 = vrot.slane %v899, 2
        %v901 = vadd.f32 %v899, %v900
        %v902 = vrot.slane %v901, 1
        %v903 = vadd.f32 %v901, %v902
        %v904 = vadd.f32 %v726, %v728
        %v905 = vadd.f32 %v904, %v730
        %v906 = vadd.f32 %v905, %v732
        %v907 = vrot.slane %v906, 4
        %v908 = vadd.f32 %v906, %v907
        %v909 = vrot.slane %v908, 2
        %v910 = vadd.f32 %v908, %v909
        %v911 = vrot.slane %v910, 1
        %v912 = vadd.f32 %v910, %v911
        %v913 = vadd.f32 %v727, %v729
        %v914 = vadd.f32 %v913, %v731
        %v915 = vadd.f32 %v914, %v733
        %v916 = vrot.slane %v915, 4
        %v917 = vadd.f32 %v915, %v916
        %v918 = vrot.slane %v917, 2
        %v919 = vadd.f32 %v917, %v918
        %v920 = vrot.slane %v919, 1
        %v921 = vadd.f32 %v919, %v920
        %v922 = vadd.f32 %v734, %v736
        %v923 = vadd.f32 %v922, %v738
        %v924 = vadd.f32 %v923, %v740
        %v925 = vrot.slane %v924, 4
        %v926 = vadd.f32 %v924, %v925
        %v927 = vrot.slane %v926, 2
        %v928 = vadd.f32 %v926, %v927
        %v929 = vrot.slane %v928, 1
        %v930 = vadd.f32 %v928, %v929
        %v931 = vadd.f32 %v735, %v737
        %v932 = vadd.f32 %v931, %v739
        %v933 = vadd.f32 %v932, %v741
        %v934 = vrot.slane %v933, 4
        %v935 = vadd.f32 %v933, %v934
        %v936 = vrot.slane %v935, 2
        %v937 = vadd.f32 %v935, %v936
        %v938 = vrot.slane %v937, 1
        %v939 = vadd.f32 %v937, %v938
        %v940 = vadd.f32 %v742, %v744
        %v941 = vadd.f32 %v940, %v746
        %v942 = vadd.f32 %v941, %v748
        %v943 = vrot.slane %v942, 4
        %v944 = vadd.f32 %v942, %v943
        %v945 = vrot.slane %v944, 2
        %v946 = vadd.f32 %v944, %v945
        %v947 = vrot.slane %v946, 1
        %v948 = vadd.f32 %v946, %v947
        %v949 = vadd.f32 %v743, %v745
        %v950 = vadd.f32 %v949, %v747
        %v951 = vadd.f32 %v950, %v749
        %v952 = vrot.slane %v951, 4
        %v953 = vadd.f32 %v951, %v952
        %v954 = vrot.slane %v953, 2
        %v955 = vadd.f32 %v953, %v954
        %v956 = vrot.slane %v955, 1
        %v957 = vadd.f32 %v955, %v956
        %v958 = vadd.f32 %v750, %v752
        %v959 = vadd.f32 %v958, %v754
        %v960 = vadd.f32 %v959, %v756
        %v961 = vrot.slane %v960, 4
        %v962 = vadd.f32 %v960, %v961
        %v963 = vrot.slane %v962, 2
        %v964 = vadd.f32 %v962, %v963
        %v965 = vrot.slane %v964, 1
        %v966 = vadd.f32 %v964, %v965
        %v967 = vadd.f32 %v751, %v753
        %v968 = vadd.f32 %v967, %v755
        %v969 = vadd.f32 %v968, %v757
        %v970 = vrot.slane %v969, 4
        %v971 = vadd.f32 %v969, %v970
        %v972 = vrot.slane %v971, 2
        %v973 = vadd.f32 %v971, %v972
        %v974 = vrot.slane %v973, 1
        %v975 = vadd.f32 %v973, %v974
        %v976 = vadd.f32 %v758, %v760
        %v977 = vadd.f32 %v976, %v762
        %v978 = vadd.f32 %v977, %v764
        %v979 = vrot.slane %v978, 4
        %v980 = vadd.f32 %v978, %v979
        %v981 = vrot.slane %v980, 2
        %v982 = vadd.f32 %v980, %v981
        %v983 = vrot.slane %v982, 1
        %v984 = vadd.f32 %v982, %v983
        %v985 = vadd.f32 %v759, %v761
        %v986 = vadd.f32 %v985, %v763
        %v987 = vadd.f32 %v986, %v765
        %v988 = vrot.slane %v987, 4
        %v989 = vadd.f32 %v987, %v988
        %v990 = vrot.slane %v989, 2
        %v991 = vadd.f32 %v989, %v990
        %v992 = vrot.slane %v991, 1
        %v993 = vadd.f32 %v991, %v992
        %v994 = vadd.f32 %v766, %v768
        %v995 = vadd.f32 %v994, %v770
        %v996 = vadd.f32 %v995, %v772
        %v997 = vrot.slane %v996, 4
        %v998 = vadd.f32 %v996, %v997
        %v999 = vrot.slane %v998, 2
        %v1000 = vadd.f32 %v998, %v999
        %v1001 = vrot.slane %v1000, 1
        %v1002 = vadd.f32 %v1000, %v1001
        %v1003 = vadd.f32 %v767, %v769
        %v1004 = vadd.f32 %v1003, %v771
        %v1005 = vadd.f32 %v1004, %v773
        %v1006 = vrot.slane %v1005, 4
        %v1007 = vadd.f32 %v1005, %v1006
        %v1008 = vrot.slane %v1007, 2
        %v1009 = vadd.f32 %v1007, %v1008
        %v1010 = vrot.slane %v1009, 1
        %v1011 = vadd.f32 %v1009, %v1010
        %v1012 = vadd.f32 %v774, %v776
        %v1013 = vadd.f32 %v1012, %v778
        %v1014 = vadd.f32 %v1013, %v780
        %v1015 = vrot.slane %v1014, 4
        %v1016 = vadd.f32 %v1014, %v1015
        %v1017 = vrot.slane %v1016, 2
        %v1018 = vadd.f32 %v1016, %v1017
        %v1019 = vrot.slane %v1018, 1
        %v1020 = vadd.f32 %v1018, %v1019
        %v1021 = vadd.f32 %v775, %v777
        %v1022 = vadd.f32 %v1021, %v779
        %v1023 = vadd.f32 %v1022, %v781
        %v1024 = vrot.slane %v1023, 4
        %v1025 = vadd.f32 %v1023, %v1024
        %v1026 = vrot.slane %v1025, 2
        %v1027 = vadd.f32 %v1025, %v1026
        %v1028 = vrot.slane %v1027, 1
        %v1029 = vadd.f32 %v1027, %v1028
        %v1030 = vadd.f32 %v782, %v784
        %v1031 = vadd.f32 %v1030, %v786
        %v1032 = vadd.f32 %v1031, %v788
        %v1033 = vrot.slane %v1032, 4
        %v1034 = vadd.f32 %v1032, %v1033
        %v1035 = vrot.slane %v1034, 2
        %v1036 = vadd.f32 %v1034, %v1035
        %v1037 = vrot.slane %v1036, 1
        %v1038 = vadd.f32 %v1036, %v1037
        %v1039 = vadd.f32 %v783, %v785
        %v1040 = vadd.f32 %v1039, %v787
        %v1041 = vadd.f32 %v1040, %v789
        %v1042 = vrot.slane %v1041, 4
        %v1043 = vadd.f32 %v1041, %v1042
        %v1044 = vrot.slane %v1043, 2
        %v1045 = vadd.f32 %v1043, %v1044
        %v1046 = vrot.slane %v1045, 1
        %v1047 = vadd.f32 %v1045, %v1046
        %v1048 = vadd.f32 %v790, %v792
        %v1049 = vadd.f32 %v1048, %v794
        %v1050 = vadd.f32 %v1049, %v796
        %v1051 = vrot.slane %v1050, 4
        %v1052 = vadd.f32 %v1050, %v1051
        %v1053 = vrot.slane %v1052, 2
        %v1054 = vadd.f32 %v1052, %v1053
        %v1055 = vrot.slane %v1054, 1
        %v1056 = vadd.f32 %v1054, %v1055
        %v1057 = vadd.f32 %v791, %v793
        %v1058 = vadd.f32 %v1057, %v795
        %v1059 = vadd.f32 %v1058, %v797
        %v1060 = vrot.slane %v1059, 4
        %v1061 = vadd.f32 %v1059, %v1060
        %v1062 = vrot.slane %v1061, 2
        %v1063 = vadd.f32 %v1061, %v1062
        %v1064 = vrot.slane %v1063, 1
        %v1065 = vadd.f32 %v1063, %v1064
        %v1066 = vadd.f32 %v798, %v800
        %v1067 = vadd.f32 %v1066, %v802
        %v1068 = vadd.f32 %v1067, %v804
        %v1069 = vrot.slane %v1068, 4
        %v1070 = vadd.f32 %v1068, %v1069
        %v1071 = vrot.slane %v1070, 2
        %v1072 = vadd.f32 %v1070, %v1071
        %v1073 = vrot.slane %v1072, 1
        %v1074 = vadd.f32 %v1072, %v1073
        %v1075 = vadd.f32 %v799, %v801
        %v1076 = vadd.f32 %v1075, %v803
        %v1077 = vadd.f32 %v1076, %v805
        %v1078 = vrot.slane %v1077, 4
        %v1079 = vadd.f32 %v1077, %v1078
        %v1080 = vrot.slane %v1079, 2
        %v1081 = vadd.f32 %v1079, %v1080
        %v1082 = vrot.slane %v1081, 1
        %v1083 = vadd.f32 %v1081, %v1082
        %v1084 = vadd.f32 %v806, %v808
        %v1085 = vadd.f32 %v1084, %v810
        %v1086 = vadd.f32 %v1085, %v812
        %v1087 = vrot.slane %v1086, 4
        %v1088 = vadd.f32 %v1086, %v1087
        %v1089 = vrot.slane %v1088, 2
        %v1090 = vadd.f32 %v1088, %v1089
        %v1091 = vrot.slane %v1090, 1
        %v1092 = vadd.f32 %v1090, %v1091
        %v1093 = vadd.f32 %v807, %v809
        %v1094 = vadd.f32 %v1093, %v811
        %v1095 = vadd.f32 %v1094, %v813
        %v1096 = vrot.slane %v1095, 4
        %v1097 = vadd.f32 %v1095, %v1096
        %v1098 = vrot.slane %v1097, 2
        %v1099 = vadd.f32 %v1097, %v1098
        %v1100 = vrot.slane %v1099, 1
        %v1101 = vadd.f32 %v1099, %v1100
        %v1103 = vrot.slane %v635, 3
        %s1104 = vtos %v1103
        %v1105 = vstv %s1104
        %v1107 = vadd.f32 %v822, %v1105
        %v1108 = vadd.f32 %v831, %v1105
        %v1109 = vadd.f32 %v840, %v1105
        %v1110 = vadd.f32 %v849, %v1105
        %v1111 = vadd.f32 %v858, %v1105
        %v1112 = vadd.f32 %v867, %v1105
        %v1113 = vadd.f32 %v876, %v1105
        %v1114 = vadd.f32 %v885, %v1105
        %v1115 = vadd.f32 %v894, %v1105
        %v1116 = vadd.f32 %v903, %v1105
        %v1117 = vadd.f32 %v912, %v1105
        %v1118 = vadd.f32 %v921, %v1105
        %v1119 = vadd.f32 %v930, %v1105
        %v1120 = vadd.f32 %v939, %v1105
        %v1121 = vadd.f32 %v948, %v1105
        %v1122 = vadd.f32 %v957, %v1105
        %1123 = vrot.lane.b32.xlu0 %v1103, 127
        %v1124 = vpop.permute.xlu0 %1123
        %s1125 = vtos %v1124
        %v1126 = vstv %s1125
        %v1128 = vadd.f32 %v966, %v1126
        %v1129 = vadd.f32 %v975, %v1126
        %v1130 = vadd.f32 %v984, %v1126
        %v1131 = vadd.f32 %v993, %v1126
        %v1132 = vadd.f32 %v1002, %v1126
        %v1133 = vadd.f32 %v1011, %v1126
        %v1134 = vadd.f32 %v1020, %v1126
        %v1135 = vadd.f32 %v1029, %v1126
        %v1136 = vadd.f32 %v1038, %v1126
        %v1137 = vadd.f32 %v1047, %v1126
        %v1138 = vadd.f32 %v1056, %v1126
        %v1139 = vadd.f32 %v1065, %v1126
        %v1140 = vadd.f32 %v1074, %v1126
        %v1141 = vadd.f32 %v1083, %v1126
        %v1142 = vadd.f32 %v1092, %v1126
        %v1143 = vadd.f32 %v1101, %v1126
        %vm1160 = vcmask 1041409
        %v1161 = vsel %vm1160, %v1109, %v1107
        %vm1162 = vcmask 1042434
        %v1163 = vsel %vm1162, %v1111, %v1161
        %vm1164 = vcmask 1043459
        %v1165 = vsel %vm1164, %v1113, %v1163
        %vm1166 = vcmask 1044484
        %v1167 = vsel %vm1166, %v1115, %v1165
        %vm1168 = vcmask 1045509
        %v1169 = vsel %vm1168, %v1117, %v1167
        %vm1170 = vcmask 1046534
        %v1171 = vsel %vm1170, %v1119, %v1169
        %vm1172 = vcmask 1047559
        %v1173 = vsel %vm1172, %v1121, %v1171
        %v1174 = vsel %vm1160, %v1110, %v1108
        %v1175 = vsel %vm1162, %v1112, %v1174
        %v1176 = vsel %vm1164, %v1114, %v1175
        %v1177 = vsel %vm1166, %v1116, %v1176
        %v1178 = vsel %vm1168, %v1118, %v1177
        %v1179 = vsel %vm1170, %v1120, %v1178
        %v1180 = vsel %vm1172, %v1122, %v1179
        %v1183 = vmul.f32 %v1128, %v1173
        %v1184 = vmul.f32 %v1129, %v1180
        %v1185 = vmul.f32 %v1130, %v1173
        %v1186 = vmul.f32 %v1131, %v1180
        %v1187 = vmul.f32 %v1132, %v1173
        %v1188 = vmul.f32 %v1133, %v1180
        %v1189 = vmul.f32 %v1134, %v1173
        %v1190 = vmul.f32 %v1135, %v1180
        %v1191 = vmul.f32 %v1136, %v1173
        %v1192 = vmul.f32 %v1137, %v1180
        %v1193 = vmul.f32 %v1138, %v1173
        %v1194 = vmul.f32 %v1139, %v1180
        %v1195 = vmul.f32 %v1140, %v1173
        %v1196 = vmul.f32 %v1141, %v1180
        %v1197 = vmul.f32 %v1142, %v1173
        %v1198 = vmul.f32 %v1143, %v1180
        %v1199 = vmax.f32 %v1183, %v1187
        %v1200 = vmax.f32 %v1185, %v1189
        %v1201 = vmax.f32 %v1199, %v1191
        %v1202 = vmax.f32 %v1200, %v1193
        %v1203 = vmax.f32 %v1201, %v1195
        %v1204 = vmax.f32 %v1202, %v1197
        %v1205 = vmax.f32 %v1203, %v1204
        %v1206 = vmax.f32 %v1184, %v1188
        %v1207 = vmax.f32 %v1186, %v1190
        %v1208 = vmax.f32 %v1206, %v1192
        %v1209 = vmax.f32 %v1207, %v1194
        %v1210 = vmax.f32 %v1208, %v1196
        %v1211 = vmax.f32 %v1209, %v1198
        %v1212 = vmax.f32 %v1210, %v1211
        %v1213 = vsub.f32 %v1183, %v1205
        %v1214 = vsub.f32 %v1184, %v1212
        %v1215 = vsub.f32 %v1185, %v1205
        %v1216 = vsub.f32 %v1186, %v1212
        %v1217 = vsub.f32 %v1187, %v1205
        %v1218 = vsub.f32 %v1188, %v1212
        %v1219 = vsub.f32 %v1189, %v1205
        %v1220 = vsub.f32 %v1190, %v1212
        %v1221 = vsub.f32 %v1191, %v1205
        %v1222 = vsub.f32 %v1192, %v1212
        %v1223 = vsub.f32 %v1193, %v1205
        %v1224 = vsub.f32 %v1194, %v1212
        %v1225 = vsub.f32 %v1195, %v1205
        %v1226 = vsub.f32 %v1196, %v1212
        %v1227 = vsub.f32 %v1197, %v1205
        %v1228 = vsub.f32 %v1198, %v1212
        %v1229 = vmul.f32 %v1213, 1.442695
        %v1230 = vpow.pop %v1229
        %v1231 = vmul.f32 %v1214, 1.442695
        %v1232 = vpow.pop %v1231
        %v1233 = vmul.f32 %v1215, 1.442695
        %v1234 = vpow.pop %v1233
        %v1235 = vmul.f32 %v1216, 1.442695
        %v1236 = vpow.pop %v1235
        %v1237 = vmul.f32 %v1217, 1.442695
        %v1238 = vpow.pop %v1237
        %v1239 = vmul.f32 %v1218, 1.442695
        %v1240 = vpow.pop %v1239
        %v1241 = vmul.f32 %v1219, 1.442695
        %v1242 = vpow.pop %v1241
        %v1243 = vmul.f32 %v1220, 1.442695
        %v1244 = vpow.pop %v1243
        %v1245 = vmul.f32 %v1221, 1.442695
        %v1246 = vpow.pop %v1245
        %v1247 = vmul.f32 %v1222, 1.442695
        %v1248 = vpow.pop %v1247
        %v1249 = vmul.f32 %v1223, 1.442695
        %v1250 = vpow.pop %v1249
        %v1251 = vmul.f32 %v1224, 1.442695
        %v1252 = vpow.pop %v1251
        %v1253 = vmul.f32 %v1225, 1.442695
        %v1254 = vpow.pop %v1253
        %v1255 = vmul.f32 %v1226, 1.442695
        %v1256 = vpow.pop %v1255
        %v1257 = vmul.f32 %v1227, 1.442695
        %v1258 = vpow.pop %v1257
        %v1259 = vmul.f32 %v1228, 1.442695
        %v1260 = vpow.pop %v1259
        %v1261 = vadd.f32 %v1230, %v1234
        %v1262 = vadd.f32 %v1261, %v1238
        %v1263 = vadd.f32 %v1262, %v1242
        %v1264 = vadd.f32 %v1263, %v1246
        %v1265 = vadd.f32 %v1264, %v1250
        %v1266 = vadd.f32 %v1265, %v1254
        %v1267 = vadd.f32 %v1266, %v1258
        %v1268 = vadd.f32 %v1232, %v1236
        %v1269 = vadd.f32 %v1268, %v1240
        %v1270 = vadd.f32 %v1269, %v1244
        %v1271 = vadd.f32 %v1270, %v1248
        %v1272 = vadd.f32 %v1271, %v1252
        %v1273 = vadd.f32 %v1272, %v1256
        %v1274 = vadd.f32 %v1273, %v1260
        %v1275 = vrcp.pop %v1267
        %v1276 = vmul.f32 %v1267, %v1275
        %v1277 = vsub.f32 1.0, %v1276
        %v1278 = vmul.f32 %v1275, %v1277
        %v1279 = vadd.f32 %v1275, %v1278
        %vm1280 = vweird.f32 %v1267
        %vm1281 = vweird.f32 %v1275
        %vm1282 = vmor %vm1280, %vm1281
        %v1283 = vsel %vm1282, %v1275, %v1279
        %v1284 = vand.u32 2147483647, %v1267
        %vm1285 = vcmp.eq.f32.partialorder %v1284, 8.507059e+37
        %v1286 = vand.u32 %v1267, 2147483648
        %v1287 = vor.u32 1.1754944e-38, %v1286
        %v1288 = vsel %vm1285, %v1287, %v1283
        %v1289 = vmul.f32 %v1230, %v1288
        %v1290 = vrcp.pop %v1274
        %v1291 = vmul.f32 %v1274, %v1290
        %v1292 = vsub.f32 1.0, %v1291
        %v1293 = vmul.f32 %v1290, %v1292
        %v1294 = vadd.f32 %v1290, %v1293
        %vm1295 = vweird.f32 %v1274
        %vm1296 = vweird.f32 %v1290
        %vm1297 = vmor %vm1295, %vm1296
        %v1298 = vsel %vm1297, %v1290, %v1294
        %v1299 = vand.u32 2147483647, %v1274
        %vm1300 = vcmp.eq.f32.partialorder %v1299, 8.507059e+37
        %v1301 = vand.u32 %v1274, 2147483648
        %v1302 = vor.u32 1.1754944e-38, %v1301
        %v1303 = vsel %vm1300, %v1302, %v1298
        %v1304 = vmul.f32 %v1232, %v1303
        %v1305 = vmul.f32 %v1234, %v1288
        %v1306 = vmul.f32 %v1236, %v1303
        %v1307 = vmul.f32 %v1238, %v1288
        %v1308 = vmul.f32 %v1240, %v1303
        %v1309 = vmul.f32 %v1242, %v1288
        %v1310 = vmul.f32 %v1244, %v1303
        %v1311 = vmul.f32 %v1246, %v1288
        %v1312 = vmul.f32 %v1248, %v1303
        %v1313 = vmul.f32 %v1250, %v1288
        %v1314 = vmul.f32 %v1252, %v1303
        %v1315 = vmul.f32 %v1254, %v1288
        %v1316 = vmul.f32 %v1256, %v1303
        %v1317 = vmul.f32 %v1258, %v1288
        %v1318 = vmul.f32 %v1260, %v1303
        %v1319 = vrot.slane %v1289, 4
        %v1320 = vadd.f32 %v1289, %v1319
        %v1321 = vrot.slane %v1320, 2
        %v1322 = vadd.f32 %v1320, %v1321
        %v1323 = vrot.slane %v1322, 1
        %v1324 = vadd.f32 %v1322, %v1323
        %v1325 = vrot.slane %v1304, 4
        %v1326 = vadd.f32 %v1304, %v1325
        %v1327 = vrot.slane %v1326, 2
        %v1328 = vadd.f32 %v1326, %v1327
        %v1329 = vrot.slane %v1328, 1
        %v1330 = vadd.f32 %v1328, %v1329
        %v1331 = vrot.slane %v1305, 4
        %v1332 = vadd.f32 %v1305, %v1331
        %v1333 = vrot.slane %v1332, 2
        %v1334 = vadd.f32 %v1332, %v1333
        %v1335 = vrot.slane %v1334, 1
        %v1336 = vadd.f32 %v1334, %v1335
        %v1337 = vrot.slane %v1306, 4
        %v1338 = vadd.f32 %v1306, %v1337
        %v1339 = vrot.slane %v1338, 2
        %v1340 = vadd.f32 %v1338, %v1339
        %v1341 = vrot.slane %v1340, 1
        %v1342 = vadd.f32 %v1340, %v1341
        %v1343 = vrot.slane %v1307, 4
        %v1344 = vadd.f32 %v1307, %v1343
        %v1345 = vrot.slane %v1344, 2
        %v1346 = vadd.f32 %v1344, %v1345
        %v1347 = vrot.slane %v1346, 1
        %v1348 = vadd.f32 %v1346, %v1347
        %v1349 = vrot.slane %v1308, 4
        %v1350 = vadd.f32 %v1308, %v1349
        %v1351 = vrot.slane %v1350, 2
        %v1352 = vadd.f32 %v1350, %v1351
        %v1353 = vrot.slane %v1352, 1
        %v1354 = vadd.f32 %v1352, %v1353
        %v1355 = vrot.slane %v1309, 4
        %v1356 = vadd.f32 %v1309, %v1355
        %v1357 = vrot.slane %v1356, 2
        %v1358 = vadd.f32 %v1356, %v1357
        %v1359 = vrot.slane %v1358, 1
        %v1360 = vadd.f32 %v1358, %v1359
        %v1361 = vrot.slane %v1310, 4
        %v1362 = vadd.f32 %v1310, %v1361
        %v1363 = vrot.slane %v1362, 2
        %v1364 = vadd.f32 %v1362, %v1363
        %v1365 = vrot.slane %v1364, 1
        %v1366 = vadd.f32 %v1364, %v1365
        %v1367 = vrot.slane %v1311, 4
        %v1368 = vadd.f32 %v1311, %v1367
        %v1369 = vrot.slane %v1368, 2
        %v1370 = vadd.f32 %v1368, %v1369
        %v1371 = vrot.slane %v1370, 1
        %v1372 = vadd.f32 %v1370, %v1371
        %v1373 = vrot.slane %v1312, 4
        %v1374 = vadd.f32 %v1312, %v1373
        %v1375 = vrot.slane %v1374, 2
        %v1376 = vadd.f32 %v1374, %v1375
        %v1377 = vrot.slane %v1376, 1
        %v1378 = vadd.f32 %v1376, %v1377
        %v1379 = vrot.slane %v1313, 4
        %v1380 = vadd.f32 %v1313, %v1379
        %v1381 = vrot.slane %v1380, 2
        %v1382 = vadd.f32 %v1380, %v1381
        %v1383 = vrot.slane %v1382, 1
        %v1384 = vadd.f32 %v1382, %v1383
        %v1385 = vrot.slane %v1314, 4
        %v1386 = vadd.f32 %v1314, %v1385
        %v1387 = vrot.slane %v1386, 2
        %v1388 = vadd.f32 %v1386, %v1387
        %v1389 = vrot.slane %v1388, 1
        %v1390 = vadd.f32 %v1388, %v1389
        %v1391 = vrot.slane %v1315, 4
        %v1392 = vadd.f32 %v1315, %v1391
        %v1393 = vrot.slane %v1392, 2
        %v1394 = vadd.f32 %v1392, %v1393
        %v1395 = vrot.slane %v1394, 1
        %v1396 = vadd.f32 %v1394, %v1395
        %v1397 = vrot.slane %v1316, 4
        %v1398 = vadd.f32 %v1316, %v1397
        %v1399 = vrot.slane %v1398, 2
        %v1400 = vadd.f32 %v1398, %v1399
        %v1401 = vrot.slane %v1400, 1
        %v1402 = vadd.f32 %v1400, %v1401
        %v1403 = vrot.slane %v1317, 4
        %v1404 = vadd.f32 %v1317, %v1403
        %v1405 = vrot.slane %v1404, 2
        %v1406 = vadd.f32 %v1404, %v1405
        %v1407 = vrot.slane %v1406, 1
        %v1408 = vadd.f32 %v1406, %v1407
        %v1409 = vrot.slane %v1318, 4
        %v1410 = vadd.f32 %v1318, %v1409
        %v1411 = vrot.slane %v1410, 2
        %v1412 = vadd.f32 %v1410, %v1411
        %v1413 = vrot.slane %v1412, 1
        %v1414 = vadd.f32 %v1412, %v1413
        %v1415 = vld [vmem:[#allocation2] sm:$0xff]
        %v1432 = vsel %vm1160, %v1336, %v1324
        %v1433 = vsel %vm1162, %v1348, %v1432
        %v1434 = vsel %vm1164, %v1360, %v1433
        %v1435 = vsel %vm1166, %v1372, %v1434
        %v1436 = vsel %vm1168, %v1384, %v1435
        %v1437 = vsel %vm1170, %v1396, %v1436
        %v1438 = vsel %vm1172, %v1408, %v1437
        %v1439 = vsel %vm1160, %v1342, %v1330
        %v1440 = vsel %vm1162, %v1354, %v1439
        %v1441 = vsel %vm1164, %v1366, %v1440
        %v1442 = vsel %vm1166, %v1378, %v1441
        %v1443 = vsel %vm1168, %v1390, %v1442
        %v1444 = vsel %vm1170, %v1402, %v1443
        %v1445 = vsel %vm1172, %v1414, %v1444
        %v1448 = vadd.f32 %v1438, %v1445
        %1449 = vadd.xlane.f32.xlu0 %v1448
        %v1450 = vpop.xlane.xlu0 %1449
        %v1451 = vadd.f32 %v1415, %v1450
        %vm1452 = vcmask 7168
        %1453 = vst.msk [vmem:[#allocation2] sm:$0xff] %vm1452, %v1451
        %v1456 = vrot.slane %v1304, 7
        %vm1457 = vcmask 1040384
        %v1458 = vsel %vm1457, %v1289, %v1456
        %v1459 = vsel %vm1160, %v1289, %v1456
        %v1460 = vrot.slane %v1459, 1
        %v1461 = vsel %vm1162, %v1289, %v1456
        %v1462 = vrot.slane %v1461, 2
        %v1463 = vsel %vm1164, %v1289, %v1456
        %v1464 = vrot.slane %v1463, 3
        %v1465 = vsel %vm1166, %v1289, %v1456
        %v1466 = vrot.slane %v1465, 4
        %v1467 = vsel %vm1168, %v1289, %v1456
        %v1468 = vrot.slane %v1467, 5
        %v1469 = vsel %vm1170, %v1289, %v1456
        %v1470 = vrot.slane %v1469, 6
        %vm1471 = vcmask 1046528
        %v1472 = vsel %vm1471, %v1456, %v1289
        %v1473 = vrot.slane %v1472, 7
        %v1474 = vperm.slane %v1458, 0
        %v1475 = vperm.slane %v1458, 1
        %v1476 = vperm.slane %v1460, 0
        %v1477 = vperm.slane %v1460, 1
        %v1478 = vperm.slane %v1462, 0
        %v1479 = vperm.slane %v1462, 1
        %v1480 = vperm.slane %v1464, 0
        %v1481 = vperm.slane %v1464, 1
        %v1482 = vperm.slane %v1466, 0
        %v1483 = vperm.slane %v1466, 1
        %v1484 = vperm.slane %v1468, 0
        %v1485 = vperm.slane %v1468, 1
        %v1486 = vperm.slane %v1470, 0
        %v1487 = vperm.slane %v1470, 1
        %v1488 = vperm.slane %v1473, 0
        %v1489 = vperm.slane %v1473, 1
        %v1506 = vmul.f32 %v1474, %v571
        %v1507 = vmul.f32 %v1475, %v572
        %v1508 = vmul.f32 %v1474, %v573
        %v1509 = vmul.f32 %v1475, %v574
        %v1510 = vmul.f32 %v1474, %v575
        %v1511 = vmul.f32 %v1475, %v576
        %v1512 = vmul.f32 %v1474, %v577
        %v1513 = vmul.f32 %v1475, %v578
        %v1514 = vmul.f32 %v1476, %v571
        %v1515 = vmul.f32 %v1477, %v572
        %v1516 = vmul.f32 %v1476, %v573
        %v1517 = vmul.f32 %v1477, %v574
        %v1518 = vmul.f32 %v1476, %v575
        %v1519 = vmul.f32 %v1477, %v576
        %v1520 = vmul.f32 %v1476, %v577
        %v1521 = vmul.f32 %v1477, %v578
        %v1522 = vmul.f32 %v1478, %v571
        %v1523 = vmul.f32 %v1479, %v572
        %v1524 = vmul.f32 %v1478, %v573
        %v1525 = vmul.f32 %v1479, %v574
        %v1526 = vmul.f32 %v1478, %v575
        %v1527 = vmul.f32 %v1479, %v576
        %v1528 = vmul.f32 %v1478, %v577
        %v1529 = vmul.f32 %v1479, %v578
        %v1530 = vmul.f32 %v1480, %v571
        %v1531 = vmul.f32 %v1481, %v572
        %v1532 = vmul.f32 %v1480, %v573
        %v1533 = vmul.f32 %v1481, %v574
        %v1534 = vmul.f32 %v1480, %v575
        %v1535 = vmul.f32 %v1481, %v576
        %v1536 = vmul.f32 %v1480, %v577
        %v1537 = vmul.f32 %v1481, %v578
        %v1538 = vmul.f32 %v1482, %v571
        %v1539 = vmul.f32 %v1483, %v572
        %v1540 = vmul.f32 %v1482, %v573
        %v1541 = vmul.f32 %v1483, %v574
        %v1542 = vmul.f32 %v1482, %v575
        %v1543 = vmul.f32 %v1483, %v576
        %v1544 = vmul.f32 %v1482, %v577
        %v1545 = vmul.f32 %v1483, %v578
        %v1546 = vmul.f32 %v1484, %v571
        %v1547 = vmul.f32 %v1485, %v572
        %v1548 = vmul.f32 %v1484, %v573
        %v1549 = vmul.f32 %v1485, %v574
        %v1550 = vmul.f32 %v1484, %v575
        %v1551 = vmul.f32 %v1485, %v576
        %v1552 = vmul.f32 %v1484, %v577
        %v1553 = vmul.f32 %v1485, %v578
        %v1554 = vmul.f32 %v1486, %v571
        %v1555 = vmul.f32 %v1487, %v572
        %v1556 = vmul.f32 %v1486, %v573
        %v1557 = vmul.f32 %v1487, %v574
        %v1558 = vmul.f32 %v1486, %v575
        %v1559 = vmul.f32 %v1487, %v576
        %v1560 = vmul.f32 %v1486, %v577
        %v1561 = vmul.f32 %v1487, %v578
        %v1562 = vmul.f32 %v1488, %v571
        %v1563 = vmul.f32 %v1489, %v572
        %v1564 = vmul.f32 %v1488, %v573
        %v1565 = vmul.f32 %v1489, %v574
        %v1566 = vmul.f32 %v1488, %v575
        %v1567 = vmul.f32 %v1489, %v576
        %v1568 = vmul.f32 %v1488, %v577
        %v1569 = vmul.f32 %v1489, %v578
        %v1572 = vrot.slane %v1306, 7
        %v1573 = vsel %vm1457, %v1305, %v1572
        %v1574 = vsel %vm1160, %v1305, %v1572
        %v1575 = vrot.slane %v1574, 1
        %v1576 = vsel %vm1162, %v1305, %v1572
        %v1577 = vrot.slane %v1576, 2
        %v1578 = vsel %vm1164, %v1305, %v1572
        %v1579 = vrot.slane %v1578, 3
        %v1580 = vsel %vm1166, %v1305, %v1572
        %v1581 = vrot.slane %v1580, 4
        %v1582 = vsel %vm1168, %v1305, %v1572
        %v1583 = vrot.slane %v1582, 5
        %v1584 = vsel %vm1170, %v1305, %v1572
        %v1585 = vrot.slane %v1584, 6
        %v1586 = vsel %vm1471, %v1572, %v1305
        %v1587 = vrot.slane %v1586, 7
        %v1588 = vperm.slane %v1573, 0
        %v1589 = vperm.slane %v1573, 1
        %v1590 = vperm.slane %v1575, 0
        %v1591 = vperm.slane %v1575, 1
        %v1592 = vperm.slane %v1577, 0
        %v1593 = vperm.slane %v1577, 1
        %v1594 = vperm.slane %v1579, 0
        %v1595 = vperm.slane %v1579, 1
        %v1596 = vperm.slane %v1581, 0
        %v1597 = vperm.slane %v1581, 1
        %v1598 = vperm.slane %v1583, 0
        %v1599 = vperm.slane %v1583, 1
        %v1600 = vperm.slane %v1585, 0
        %v1601 = vperm.slane %v1585, 1
        %v1602 = vperm.slane %v1587, 0
        %v1603 = vperm.slane %v1587, 1
        %v1620 = vmul.f32 %v1588, %v579
        %v1621 = vmul.f32 %v1589, %v580
        %v1622 = vmul.f32 %v1588, %v581
        %v1623 = vmul.f32 %v1589, %v582
        %v1624 = vmul.f32 %v1588, %v583
        %v1625 = vmul.f32 %v1589, %v584
        %v1626 = vmul.f32 %v1588, %v585
        %v1627 = vmul.f32 %v1589, %v586
        %v1628 = vmul.f32 %v1590, %v579
        %v1629 = vmul.f32 %v1591, %v580
        %v1630 = vmul.f32 %v1590, %v581
        %v1631 = vmul.f32 %v1591, %v582
        %v1632 = vmul.f32 %v1590, %v583
        %v1633 = vmul.f32 %v1591, %v584
        %v1634 = vmul.f32 %v1590, %v585
        %v1635 = vmul.f32 %v1591, %v586
        %v1636 = vmul.f32 %v1592, %v579
        %v1637 = vmul.f32 %v1593, %v580
        %v1638 = vmul.f32 %v1592, %v581
        %v1639 = vmul.f32 %v1593, %v582
        %v1640 = vmul.f32 %v1592, %v583
        %v1641 = vmul.f32 %v1593, %v584
        %v1642 = vmul.f32 %v1592, %v585
        %v1643 = vmul.f32 %v1593, %v586
        %v1644 = vmul.f32 %v1594, %v579
        %v1645 = vmul.f32 %v1595, %v580
        %v1646 = vmul.f32 %v1594, %v581
        %v1647 = vmul.f32 %v1595, %v582
        %v1648 = vmul.f32 %v1594, %v583
        %v1649 = vmul.f32 %v1595, %v584
        %v1650 = vmul.f32 %v1594, %v585
        %v1651 = vmul.f32 %v1595, %v586
        %v1652 = vmul.f32 %v1596, %v579
        %v1653 = vmul.f32 %v1597, %v580
        %v1654 = vmul.f32 %v1596, %v581
        %v1655 = vmul.f32 %v1597, %v582
        %v1656 = vmul.f32 %v1596, %v583
        %v1657 = vmul.f32 %v1597, %v584
        %v1658 = vmul.f32 %v1596, %v585
        %v1659 = vmul.f32 %v1597, %v586
        %v1660 = vmul.f32 %v1598, %v579
        %v1661 = vmul.f32 %v1599, %v580
        %v1662 = vmul.f32 %v1598, %v581
        %v1663 = vmul.f32 %v1599, %v582
        %v1664 = vmul.f32 %v1598, %v583
        %v1665 = vmul.f32 %v1599, %v584
        %v1666 = vmul.f32 %v1598, %v585
        %v1667 = vmul.f32 %v1599, %v586
        %v1668 = vmul.f32 %v1600, %v579
        %v1669 = vmul.f32 %v1601, %v580
        %v1670 = vmul.f32 %v1600, %v581
        %v1671 = vmul.f32 %v1601, %v582
        %v1672 = vmul.f32 %v1600, %v583
        %v1673 = vmul.f32 %v1601, %v584
        %v1674 = vmul.f32 %v1600, %v585
        %v1675 = vmul.f32 %v1601, %v586
        %v1676 = vmul.f32 %v1602, %v579
        %v1677 = vmul.f32 %v1603, %v580
        %v1678 = vmul.f32 %v1602, %v581
        %v1679 = vmul.f32 %v1603, %v582
        %v1680 = vmul.f32 %v1602, %v583
        %v1681 = vmul.f32 %v1603, %v584
        %v1682 = vmul.f32 %v1602, %v585
        %v1683 = vmul.f32 %v1603, %v586
        %v1684 = vadd.f32 %v1506, %v1620
        %v1685 = vadd.f32 %v1507, %v1621
        %v1686 = vadd.f32 %v1508, %v1622
        %v1687 = vadd.f32 %v1509, %v1623
        %v1688 = vadd.f32 %v1510, %v1624
        %v1689 = vadd.f32 %v1511, %v1625
        %v1690 = vadd.f32 %v1512, %v1626
        %v1691 = vadd.f32 %v1513, %v1627
        %v1692 = vadd.f32 %v1514, %v1628
        %v1693 = vadd.f32 %v1515, %v1629
        %v1694 = vadd.f32 %v1516, %v1630
        %v1695 = vadd.f32 %v1517, %v1631
        %v1696 = vadd.f32 %v1518, %v1632
        %v1697 = vadd.f32 %v1519, %v1633
        %v1698 = vadd.f32 %v1520, %v1634
        %v1699 = vadd.f32 %v1521, %v1635
        %v1700 = vadd.f32 %v1522, %v1636
        %v1701 = vadd.f32 %v1523, %v1637
        %v1702 = vadd.f32 %v1524, %v1638
        %v1703 = vadd.f32 %v1525, %v1639
        %v1704 = vadd.f32 %v1526, %v1640
        %v1705 = vadd.f32 %v1527, %v1641
        %v1706 = vadd.f32 %v1528, %v1642
        %v1707 = vadd.f32 %v1529, %v1643
        %v1708 = vadd.f32 %v1530, %v1644
        %v1709 = vadd.f32 %v1531, %v1645
        %v1710 = vadd.f32 %v1532, %v1646
        %v1711 = vadd.f32 %v1533, %v1647
        %v1712 = vadd.f32 %v1534, %v1648
        %v1713 = vadd.f32 %v1535, %v1649
        %v1714 = vadd.f32 %v1536, %v1650
        %v1715 = vadd.f32 %v1537, %v1651
        %v1716 = vadd.f32 %v1538, %v1652
        %v1717 = vadd.f32 %v1539, %v1653
        %v1718 = vadd.f32 %v1540, %v1654
        %v1719 = vadd.f32 %v1541, %v1655
        %v1720 = vadd.f32 %v1542, %v1656
        %v1721 = vadd.f32 %v1543, %v1657
        %v1722 = vadd.f32 %v1544, %v1658
        %v1723 = vadd.f32 %v1545, %v1659
        %v1724 = vadd.f32 %v1546, %v1660
        %v1725 = vadd.f32 %v1547, %v1661
        %v1726 = vadd.f32 %v1548, %v1662
        %v1727 = vadd.f32 %v1549, %v1663
        %v1728 = vadd.f32 %v1550, %v1664
        %v1729 = vadd.f32 %v1551, %v1665
        %v1730 = vadd.f32 %v1552, %v1666
        %v1731 = vadd.f32 %v1553, %v1667
        %v1732 = vadd.f32 %v1554, %v1668
        %v1733 = vadd.f32 %v1555, %v1669
        %v1734 = vadd.f32 %v1556, %v1670
        %v1735 = vadd.f32 %v1557, %v1671
        %v1736 = vadd.f32 %v1558, %v1672
        %v1737 = vadd.f32 %v1559, %v1673
        %v1738 = vadd.f32 %v1560, %v1674
        %v1739 = vadd.f32 %v1561, %v1675
        %v1740 = vadd.f32 %v1562, %v1676
        %v1741 = vadd.f32 %v1563, %v1677
        %v1742 = vadd.f32 %v1564, %v1678
        %v1743 = vadd.f32 %v1565, %v1679
        %v1744 = vadd.f32 %v1566, %v1680
        %v1745 = vadd.f32 %v1567, %v1681
        %v1746 = vadd.f32 %v1568, %v1682
        %v1747 = vadd.f32 %v1569, %v1683
        %v1750 = vrot.slane %v1308, 7
        %v1751 = vsel %vm1457, %v1307, %v1750
        %v1752 = vsel %vm1160, %v1307, %v1750
        %v1753 = vrot.slane %v1752, 1
        %v1754 = vsel %vm1162, %v1307, %v1750
        %v1755 = vrot.slane %v1754, 2
        %v1756 = vsel %vm1164, %v1307, %v1750
        %v1757 = vrot.slane %v1756, 3
        %v1758 = vsel %vm1166, %v1307, %v1750
        %v1759 = vrot.slane %v1758, 4
        %v1760 = vsel %vm1168, %v1307, %v1750
        %v1761 = vrot.slane %v1760, 5
        %v1762 = vsel %vm1170, %v1307, %v1750
        %v1763 = vrot.slane %v1762, 6
        %v1764 = vsel %vm1471, %v1750, %v1307
        %v1765 = vrot.slane %v1764, 7
        %v1766 = vperm.slane %v1751, 0
        %v1767 = vperm.slane %v1751, 1
        %v1768 = vperm.slane %v1753, 0
        %v1769 = vperm.slane %v1753, 1
        %v1770 = vperm.slane %v1755, 0
        %v1771 = vperm.slane %v1755, 1
        %v1772 = vperm.slane %v1757, 0
        %v1773 = vperm.slane %v1757, 1
        %v1774 = vperm.slane %v1759, 0
        %v1775 = vperm.slane %v1759, 1
        %v1776 = vperm.slane %v1761, 0
        %v1777 = vperm.slane %v1761, 1
        %v1778 = vperm.slane %v1763, 0
        %v1779 = vperm.slane %v1763, 1
        %v1780 = vperm.slane %v1765, 0
        %v1781 = vperm.slane %v1765, 1
        %v1798 = vmul.f32 %v1766, %v587
        %v1799 = vmul.f32 %v1767, %v588
        %v1800 = vmul.f32 %v1766, %v589
        %v1801 = vmul.f32 %v1767, %v590
        %v1802 = vmul.f32 %v1766, %v591
        %v1803 = vmul.f32 %v1767, %v592
        %v1804 = vmul.f32 %v1766, %v593
        %v1805 = vmul.f32 %v1767, %v594
        %v1806 = vmul.f32 %v1768, %v587
        %v1807 = vmul.f32 %v1769, %v588
        %v1808 = vmul.f32 %v1768, %v589
        %v1809 = vmul.f32 %v1769, %v590
        %v1810 = vmul.f32 %v1768, %v591
        %v1811 = vmul.f32 %v1769, %v592
        %v1812 = vmul.f32 %v1768, %v593
        %v1813 = vmul.f32 %v1769, %v594
        %v1814 = vmul.f32 %v1770, %v587
        %v1815 = vmul.f32 %v1771, %v588
        %v1816 = vmul.f32 %v1770, %v589
        %v1817 = vmul.f32 %v1771, %v590
        %v1818 = vmul.f32 %v1770, %v591
        %v1819 = vmul.f32 %v1771, %v592
        %v1820 = vmul.f32 %v1770, %v593
        %v1821 = vmul.f32 %v1771, %v594
        %v1822 = vmul.f32 %v1772, %v587
        %v1823 = vmul.f32 %v1773, %v588
        %v1824 = vmul.f32 %v1772, %v589
        %v1825 = vmul.f32 %v1773, %v590
        %v1826 = vmul.f32 %v1772, %v591
        %v1827 = vmul.f32 %v1773, %v592
        %v1828 = vmul.f32 %v1772, %v593
        %v1829 = vmul.f32 %v1773, %v594
        %v1830 = vmul.f32 %v1774, %v587
        %v1831 = vmul.f32 %v1775, %v588
        %v1832 = vmul.f32 %v1774, %v589
        %v1833 = vmul.f32 %v1775, %v590
        %v1834 = vmul.f32 %v1774, %v591
        %v1835 = vmul.f32 %v1775, %v592
        %v1836 = vmul.f32 %v1774, %v593
        %v1837 = vmul.f32 %v1775, %v594
        %v1838 = vmul.f32 %v1776, %v587
        %v1839 = vmul.f32 %v1777, %v588
        %v1840 = vmul.f32 %v1776, %v589
        %v1841 = vmul.f32 %v1777, %v590
        %v1842 = vmul.f32 %v1776, %v591
        %v1843 = vmul.f32 %v1777, %v592
        %v1844 = vmul.f32 %v1776, %v593
        %v1845 = vmul.f32 %v1777, %v594
        %v1846 = vmul.f32 %v1778, %v587
        %v1847 = vmul.f32 %v1779, %v588
        %v1848 = vmul.f32 %v1778, %v589
        %v1849 = vmul.f32 %v1779, %v590
        %v1850 = vmul.f32 %v1778, %v591
        %v1851 = vmul.f32 %v1779, %v592
        %v1852 = vmul.f32 %v1778, %v593
        %v1853 = vmul.f32 %v1779, %v594
        %v1854 = vmul.f32 %v1780, %v587
        %v1855 = vmul.f32 %v1781, %v588
        %v1856 = vmul.f32 %v1780, %v589
        %v1857 = vmul.f32 %v1781, %v590
        %v1858 = vmul.f32 %v1780, %v591
        %v1859 = vmul.f32 %v1781, %v592
        %v1860 = vmul.f32 %v1780, %v593
        %v1861 = vmul.f32 %v1781, %v594
        %v1862 = vadd.f32 %v1684, %v1798
        %v1863 = vadd.f32 %v1685, %v1799
        %v1864 = vadd.f32 %v1686, %v1800
        %v1865 = vadd.f32 %v1687, %v1801
        %v1866 = vadd.f32 %v1688, %v1802
        %v1867 = vadd.f32 %v1689, %v1803
        %v1868 = vadd.f32 %v1690, %v1804
        %v1869 = vadd.f32 %v1691, %v1805
        %v1870 = vadd.f32 %v1692, %v1806
        %v1871 = vadd.f32 %v1693, %v1807
        %v1872 = vadd.f32 %v1694, %v1808
        %v1873 = vadd.f32 %v1695, %v1809
        %v1874 = vadd.f32 %v1696, %v1810
        %v1875 = vadd.f32 %v1697, %v1811
        %v1876 = vadd.f32 %v1698, %v1812
        %v1877 = vadd.f32 %v1699, %v1813
        %v1878 = vadd.f32 %v1700, %v1814
        %v1879 = vadd.f32 %v1701, %v1815
        %v1880 = vadd.f32 %v1702, %v1816
        %v1881 = vadd.f32 %v1703, %v1817
        %v1882 = vadd.f32 %v1704, %v1818
        %v1883 = vadd.f32 %v1705, %v1819
        %v1884 = vadd.f32 %v1706, %v1820
        %v1885 = vadd.f32 %v1707, %v1821
        %v1886 = vadd.f32 %v1708, %v1822
        %v1887 = vadd.f32 %v1709, %v1823
        %v1888 = vadd.f32 %v1710, %v1824
        %v1889 = vadd.f32 %v1711, %v1825
        %v1890 = vadd.f32 %v1712, %v1826
        %v1891 = vadd.f32 %v1713, %v1827
        %v1892 = vadd.f32 %v1714, %v1828
        %v1893 = vadd.f32 %v1715, %v1829
        %v1894 = vadd.f32 %v1716, %v1830
        %v1895 = vadd.f32 %v1717, %v1831
        %v1896 = vadd.f32 %v1718, %v1832
        %v1897 = vadd.f32 %v1719, %v1833
        %v1898 = vadd.f32 %v1720, %v1834
        %v1899 = vadd.f32 %v1721, %v1835
        %v1900 = vadd.f32 %v1722, %v1836
        %v1901 = vadd.f32 %v1723, %v1837
        %v1902 = vadd.f32 %v1724, %v1838
        %v1903 = vadd.f32 %v1725, %v1839
        %v1904 = vadd.f32 %v1726, %v1840
        %v1905 = vadd.f32 %v1727, %v1841
        %v1906 = vadd.f32 %v1728, %v1842
        %v1907 = vadd.f32 %v1729, %v1843
        %v1908 = vadd.f32 %v1730, %v1844
        %v1909 = vadd.f32 %v1731, %v1845
        %v1910 = vadd.f32 %v1732, %v1846
        %v1911 = vadd.f32 %v1733, %v1847
        %v1912 = vadd.f32 %v1734, %v1848
        %v1913 = vadd.f32 %v1735, %v1849
        %v1914 = vadd.f32 %v1736, %v1850
        %v1915 = vadd.f32 %v1737, %v1851
        %v1916 = vadd.f32 %v1738, %v1852
        %v1917 = vadd.f32 %v1739, %v1853
        %v1918 = vadd.f32 %v1740, %v1854
        %v1919 = vadd.f32 %v1741, %v1855
        %v1920 = vadd.f32 %v1742, %v1856
        %v1921 = vadd.f32 %v1743, %v1857
        %v1922 = vadd.f32 %v1744, %v1858
        %v1923 = vadd.f32 %v1745, %v1859
        %v1924 = vadd.f32 %v1746, %v1860
        %v1925 = vadd.f32 %v1747, %v1861
        %v1928 = vrot.slane %v1310, 7
        %v1929 = vsel %vm1457, %v1309, %v1928
        %v1930 = vsel %vm1160, %v1309, %v1928
        %v1931 = vrot.slane %v1930, 1
        %v1932 = vsel %vm1162, %v1309, %v1928
        %v1933 = vrot.slane %v1932, 2
        %v1934 = vsel %vm1164, %v1309, %v1928
        %v1935 = vrot.slane %v1934, 3
        %v1936 = vsel %vm1166, %v1309, %v1928
        %v1937 = vrot.slane %v1936, 4
        %v1938 = vsel %vm1168, %v1309, %v1928
        %v1939 = vrot.slane %v1938, 5
        %v1940 = vsel %vm1170, %v1309, %v1928
        %v1941 = vrot.slane %v1940, 6
        %v1942 = vsel %vm1471, %v1928, %v1309
        %v1943 = vrot.slane %v1942, 7
        %v1944 = vperm.slane %v1929, 0
        %v1945 = vperm.slane %v1929, 1
        %v1946 = vperm.slane %v1931, 0
        %v1947 = vperm.slane %v1931, 1
        %v1948 = vperm.slane %v1933, 0
        %v1949 = vperm.slane %v1933, 1
        %v1950 = vperm.slane %v1935, 0
        %v1951 = vperm.slane %v1935, 1
        %v1952 = vperm.slane %v1937, 0
        %v1953 = vperm.slane %v1937, 1
        %v1954 = vperm.slane %v1939, 0
        %v1955 = vperm.slane %v1939, 1
        %v1956 = vperm.slane %v1941, 0
        %v1957 = vperm.slane %v1941, 1
        %v1958 = vperm.slane %v1943, 0
        %v1959 = vperm.slane %v1943, 1
        %v1976 = vmul.f32 %v1944, %v595
        %v1977 = vmul.f32 %v1945, %v596
        %v1978 = vmul.f32 %v1944, %v597
        %v1979 = vmul.f32 %v1945, %v598
        %v1980 = vmul.f32 %v1944, %v599
        %v1981 = vmul.f32 %v1945, %v600
        %v1982 = vmul.f32 %v1944, %v601
        %v1983 = vmul.f32 %v1945, %v602
        %v1984 = vmul.f32 %v1946, %v595
        %v1985 = vmul.f32 %v1947, %v596
        %v1986 = vmul.f32 %v1946, %v597
        %v1987 = vmul.f32 %v1947, %v598
        %v1988 = vmul.f32 %v1946, %v599
        %v1989 = vmul.f32 %v1947, %v600
        %v1990 = vmul.f32 %v1946, %v601
        %v1991 = vmul.f32 %v1947, %v602
        %v1992 = vmul.f32 %v1948, %v595
        %v1993 = vmul.f32 %v1949, %v596
        %v1994 = vmul.f32 %v1948, %v597
        %v1995 = vmul.f32 %v1949, %v598
        %v1996 = vmul.f32 %v1948, %v599
        %v1997 = vmul.f32 %v1949, %v600
        %v1998 = vmul.f32 %v1948, %v601
        %v1999 = vmul.f32 %v1949, %v602
        %v2000 = vmul.f32 %v1950, %v595
        %v2001 = vmul.f32 %v1951, %v596
        %v2002 = vmul.f32 %v1950, %v597
        %v2003 = vmul.f32 %v1951, %v598
        %v2004 = vmul.f32 %v1950, %v599
        %v2005 = vmul.f32 %v1951, %v600
        %v2006 = vmul.f32 %v1950, %v601
        %v2007 = vmul.f32 %v1951, %v602
        %v2008 = vmul.f32 %v1952, %v595
        %v2009 = vmul.f32 %v1953, %v596
        %v2010 = vmul.f32 %v1952, %v597
        %v2011 = vmul.f32 %v1953, %v598
        %v2012 = vmul.f32 %v1952, %v599
        %v2013 = vmul.f32 %v1953, %v600
        %v2014 = vmul.f32 %v1952, %v601
        %v2015 = vmul.f32 %v1953, %v602
        %v2016 = vmul.f32 %v1954, %v595
        %v2017 = vmul.f32 %v1955, %v596
        %v2018 = vmul.f32 %v1954, %v597
        %v2019 = vmul.f32 %v1955, %v598
        %v2020 = vmul.f32 %v1954, %v599
        %v2021 = vmul.f32 %v1955, %v600
        %v2022 = vmul.f32 %v1954, %v601
        %v2023 = vmul.f32 %v1955, %v602
        %v2024 = vmul.f32 %v1956, %v595
        %v2025 = vmul.f32 %v1957, %v596
        %v2026 = vmul.f32 %v1956, %v597
        %v2027 = vmul.f32 %v1957, %v598
        %v2028 = vmul.f32 %v1956, %v599
        %v2029 = vmul.f32 %v1957, %v600
        %v2030 = vmul.f32 %v1956, %v601
        %v2031 = vmul.f32 %v1957, %v602
        %v2032 = vmul.f32 %v1958, %v595
        %v2033 = vmul.f32 %v1959, %v596
        %v2034 = vmul.f32 %v1958, %v597
        %v2035 = vmul.f32 %v1959, %v598
        %v2036 = vmul.f32 %v1958, %v599
        %v2037 = vmul.f32 %v1959, %v600
        %v2038 = vmul.f32 %v1958, %v601
        %v2039 = vmul.f32 %v1959, %v602
        %v2040 = vadd.f32 %v1862, %v1976
        %v2041 = vadd.f32 %v1863, %v1977
        %v2042 = vadd.f32 %v1864, %v1978
        %v2043 = vadd.f32 %v1865, %v1979
        %v2044 = vadd.f32 %v1866, %v1980
        %v2045 = vadd.f32 %v1867, %v1981
        %v2046 = vadd.f32 %v1868, %v1982
        %v2047 = vadd.f32 %v1869, %v1983
        %v2048 = vadd.f32 %v1870, %v1984
        %v2049 = vadd.f32 %v1871, %v1985
        %v2050 = vadd.f32 %v1872, %v1986
        %v2051 = vadd.f32 %v1873, %v1987
        %v2052 = vadd.f32 %v1874, %v1988
        %v2053 = vadd.f32 %v1875, %v1989
        %v2054 = vadd.f32 %v1876, %v1990
        %v2055 = vadd.f32 %v1877, %v1991
        %v2056 = vadd.f32 %v1878, %v1992
        %v2057 = vadd.f32 %v1879, %v1993
        %v2058 = vadd.f32 %v1880, %v1994
        %v2059 = vadd.f32 %v1881, %v1995
        %v2060 = vadd.f32 %v1882, %v1996
        %v2061 = vadd.f32 %v1883, %v1997
        %v2062 = vadd.f32 %v1884, %v1998
        %v2063 = vadd.f32 %v1885, %v1999
        %v2064 = vadd.f32 %v1886, %v2000
        %v2065 = vadd.f32 %v1887, %v2001
        %v2066 = vadd.f32 %v1888, %v2002
        %v2067 = vadd.f32 %v1889, %v2003
        %v2068 = vadd.f32 %v1890, %v2004
        %v2069 = vadd.f32 %v1891, %v2005
        %v2070 = vadd.f32 %v1892, %v2006
        %v2071 = vadd.f32 %v1893, %v2007
        %v2072 = vadd.f32 %v1894, %v2008
        %v2073 = vadd.f32 %v1895, %v2009
        %v2074 = vadd.f32 %v1896, %v2010
        %v2075 = vadd.f32 %v1897, %v2011
        %v2076 = vadd.f32 %v1898, %v2012
        %v2077 = vadd.f32 %v1899, %v2013
        %v2078 = vadd.f32 %v1900, %v2014
        %v2079 = vadd.f32 %v1901, %v2015
        %v2080 = vadd.f32 %v1902, %v2016
        %v2081 = vadd.f32 %v1903, %v2017
        %v2082 = vadd.f32 %v1904, %v2018
        %v2083 = vadd.f32 %v1905, %v2019
        %v2084 = vadd.f32 %v1906, %v2020
        %v2085 = vadd.f32 %v1907, %v2021
        %v2086 = vadd.f32 %v1908, %v2022
        %v2087 = vadd.f32 %v1909, %v2023
        %v2088 = vadd.f32 %v1910, %v2024
        %v2089 = vadd.f32 %v1911, %v2025
        %v2090 = vadd.f32 %v1912, %v2026
        %v2091 = vadd.f32 %v1913, %v2027
        %v2092 = vadd.f32 %v1914, %v2028
        %v2093 = vadd.f32 %v1915, %v2029
        %v2094 = vadd.f32 %v1916, %v2030
        %v2095 = vadd.f32 %v1917, %v2031
        %v2096 = vadd.f32 %v1918, %v2032
        %v2097 = vadd.f32 %v1919, %v2033
        %v2098 = vadd.f32 %v1920, %v2034
        %v2099 = vadd.f32 %v1921, %v2035
        %v2100 = vadd.f32 %v1922, %v2036
        %v2101 = vadd.f32 %v1923, %v2037
        %v2102 = vadd.f32 %v1924, %v2038
        %v2103 = vadd.f32 %v1925, %v2039
        %v2106 = vrot.slane %v1312, 7
        %v2107 = vsel %vm1457, %v1311, %v2106
        %v2108 = vsel %vm1160, %v1311, %v2106
        %v2109 = vrot.slane %v2108, 1
        %v2110 = vsel %vm1162, %v1311, %v2106
        %v2111 = vrot.slane %v2110, 2
        %v2112 = vsel %vm1164, %v1311, %v2106
        %v2113 = vrot.slane %v2112, 3
        %v2114 = vsel %vm1166, %v1311, %v2106
        %v2115 = vrot.slane %v2114, 4
        %v2116 = vsel %vm1168, %v1311, %v2106
        %v2117 = vrot.slane %v2116, 5
        %v2118 = vsel %vm1170, %v1311, %v2106
        %v2119 = vrot.slane %v2118, 6
        %v2120 = vsel %vm1471, %v2106, %v1311
        %v2121 = vrot.slane %v2120, 7
        %v2122 = vperm.slane %v2107, 0
        %v2123 = vperm.slane %v2107, 1
        %v2124 = vperm.slane %v2109, 0
        %v2125 = vperm.slane %v2109, 1
        %v2126 = vperm.slane %v2111, 0
        %v2127 = vperm.slane %v2111, 1
        %v2128 = vperm.slane %v2113, 0
        %v2129 = vperm.slane %v2113, 1
        %v2130 = vperm.slane %v2115, 0
        %v2131 = vperm.slane %v2115, 1
        %v2132 = vperm.slane %v2117, 0
        %v2133 = vperm.slane %v2117, 1
        %v2134 = vperm.slane %v2119, 0
        %v2135 = vperm.slane %v2119, 1
        %v2136 = vperm.slane %v2121, 0
        %v2137 = vperm.slane %v2121, 1
        %v2154 = vmul.f32 %v2122, %v603
        %v2155 = vmul.f32 %v2123, %v604
        %v2156 = vmul.f32 %v2122, %v605
        %v2157 = vmul.f32 %v2123, %v606
        %v2158 = vmul.f32 %v2122, %v607
        %v2159 = vmul.f32 %v2123, %v608
        %v2160 = vmul.f32 %v2122, %v609
        %v2161 = vmul.f32 %v2123, %v610
        %v2162 = vmul.f32 %v2124, %v603
        %v2163 = vmul.f32 %v2125, %v604
        %v2164 = vmul.f32 %v2124, %v605
        %v2165 = vmul.f32 %v2125, %v606
        %v2166 = vmul.f32 %v2124, %v607
        %v2167 = vmul.f32 %v2125, %v608
        %v2168 = vmul.f32 %v2124, %v609
        %v2169 = vmul.f32 %v2125, %v610
        %v2170 = vmul.f32 %v2126, %v603
        %v2171 = vmul.f32 %v2127, %v604
        %v2172 = vmul.f32 %v2126, %v605
        %v2173 = vmul.f32 %v2127, %v606
        %v2174 = vmul.f32 %v2126, %v607
        %v2175 = vmul.f32 %v2127, %v608
        %v2176 = vmul.f32 %v2126, %v609
        %v2177 = vmul.f32 %v2127, %v610
        %v2178 = vmul.f32 %v2128, %v603
        %v2179 = vmul.f32 %v2129, %v604
        %v2180 = vmul.f32 %v2128, %v605
        %v2181 = vmul.f32 %v2129, %v606
        %v2182 = vmul.f32 %v2128, %v607
        %v2183 = vmul.f32 %v2129, %v608
        %v2184 = vmul.f32 %v2128, %v609
        %v2185 = vmul.f32 %v2129, %v610
        %v2186 = vmul.f32 %v2130, %v603
        %v2187 = vmul.f32 %v2131, %v604
        %v2188 = vmul.f32 %v2130, %v605
        %v2189 = vmul.f32 %v2131, %v606
        %v2190 = vmul.f32 %v2130, %v607
        %v2191 = vmul.f32 %v2131, %v608
        %v2192 = vmul.f32 %v2130, %v609
        %v2193 = vmul.f32 %v2131, %v610
        %v2194 = vmul.f32 %v2132, %v603
        %v2195 = vmul.f32 %v2133, %v604
        %v2196 = vmul.f32 %v2132, %v605
        %v2197 = vmul.f32 %v2133, %v606
        %v2198 = vmul.f32 %v2132, %v607
        %v2199 = vmul.f32 %v2133, %v608
        %v2200 = vmul.f32 %v2132, %v609
        %v2201 = vmul.f32 %v2133, %v610
        %v2202 = vmul.f32 %v2134, %v603
        %v2203 = vmul.f32 %v2135, %v604
        %v2204 = vmul.f32 %v2134, %v605
        %v2205 = vmul.f32 %v2135, %v606
        %v2206 = vmul.f32 %v2134, %v607
        %v2207 = vmul.f32 %v2135, %v608
        %v2208 = vmul.f32 %v2134, %v609
        %v2209 = vmul.f32 %v2135, %v610
        %v2210 = vmul.f32 %v2136, %v603
        %v2211 = vmul.f32 %v2137, %v604
        %v2212 = vmul.f32 %v2136, %v605
        %v2213 = vmul.f32 %v2137, %v606
        %v2214 = vmul.f32 %v2136, %v607
        %v2215 = vmul.f32 %v2137, %v608
        %v2216 = vmul.f32 %v2136, %v609
        %v2217 = vmul.f32 %v2137, %v610
        %v2218 = vadd.f32 %v2040, %v2154
        %v2219 = vadd.f32 %v2041, %v2155
        %v2220 = vadd.f32 %v2042, %v2156
        %v2221 = vadd.f32 %v2043, %v2157
        %v2222 = vadd.f32 %v2044, %v2158
        %v2223 = vadd.f32 %v2045, %v2159
        %v2224 = vadd.f32 %v2046, %v2160
        %v2225 = vadd.f32 %v2047, %v2161
        %v2226 = vadd.f32 %v2048, %v2162
        %v2227 = vadd.f32 %v2049, %v2163
        %v2228 = vadd.f32 %v2050, %v2164
        %v2229 = vadd.f32 %v2051, %v2165
        %v2230 = vadd.f32 %v2052, %v2166
        %v2231 = vadd.f32 %v2053, %v2167
        %v2232 = vadd.f32 %v2054, %v2168
        %v2233 = vadd.f32 %v2055, %v2169
        %v2234 = vadd.f32 %v2056, %v2170
        %v2235 = vadd.f32 %v2057, %v2171
        %v2236 = vadd.f32 %v2058, %v2172
        %v2237 = vadd.f32 %v2059, %v2173
        %v2238 = vadd.f32 %v2060, %v2174
        %v2239 = vadd.f32 %v2061, %v2175
        %v2240 = vadd.f32 %v2062, %v2176
        %v2241 = vadd.f32 %v2063, %v2177
        %v2242 = vadd.f32 %v2064, %v2178
        %v2243 = vadd.f32 %v2065, %v2179
        %v2244 = vadd.f32 %v2066, %v2180
        %v2245 = vadd.f32 %v2067, %v2181
        %v2246 = vadd.f32 %v2068, %v2182
        %v2247 = vadd.f32 %v2069, %v2183
        %v2248 = vadd.f32 %v2070, %v2184
        %v2249 = vadd.f32 %v2071, %v2185
        %v2250 = vadd.f32 %v2072, %v2186
        %v2251 = vadd.f32 %v2073, %v2187
        %v2252 = vadd.f32 %v2074, %v2188
        %v2253 = vadd.f32 %v2075, %v2189
        %v2254 = vadd.f32 %v2076, %v2190
        %v2255 = vadd.f32 %v2077, %v2191
        %v2256 = vadd.f32 %v2078, %v2192
        %v2257 = vadd.f32 %v2079, %v2193
        %v2258 = vadd.f32 %v2080, %v2194
        %v2259 = vadd.f32 %v2081, %v2195
        %v2260 = vadd.f32 %v2082, %v2196
        %v2261 = vadd.f32 %v2083, %v2197
        %v2262 = vadd.f32 %v2084, %v2198
        %v2263 = vadd.f32 %v2085, %v2199
        %v2264 = vadd.f32 %v2086, %v2200
        %v2265 = vadd.f32 %v2087, %v2201
        %v2266 = vadd.f32 %v2088, %v2202
        %v2267 = vadd.f32 %v2089, %v2203
        %v2268 = vadd.f32 %v2090, %v2204
        %v2269 = vadd.f32 %v2091, %v2205
        %v2270 = vadd.f32 %v2092, %v2206
        %v2271 = vadd.f32 %v2093, %v2207
        %v2272 = vadd.f32 %v2094, %v2208
        %v2273 = vadd.f32 %v2095, %v2209
        %v2274 = vadd.f32 %v2096, %v2210
        %v2275 = vadd.f32 %v2097, %v2211
        %v2276 = vadd.f32 %v2098, %v2212
        %v2277 = vadd.f32 %v2099, %v2213
        %v2278 = vadd.f32 %v2100, %v2214
        %v2279 = vadd.f32 %v2101, %v2215
        %v2280 = vadd.f32 %v2102, %v2216
        %v2281 = vadd.f32 %v2103, %v2217
        %v2284 = vrot.slane %v1314, 7
        %v2285 = vsel %vm1457, %v1313, %v2284
        %v2286 = vsel %vm1160, %v1313, %v2284
        %v2287 = vrot.slane %v2286, 1
        %v2288 = vsel %vm1162, %v1313, %v2284
        %v2289 = vrot.slane %v2288, 2
        %v2290 = vsel %vm1164, %v1313, %v2284
        %v2291 = vrot.slane %v2290, 3
        %v2292 = vsel %vm1166, %v1313, %v2284
        %v2293 = vrot.slane %v2292, 4
        %v2294 = vsel %vm1168, %v1313, %v2284
        %v2295 = vrot.slane %v2294, 5
        %v2296 = vsel %vm1170, %v1313, %v2284
        %v2297 = vrot.slane %v2296, 6
        %v2298 = vsel %vm1471, %v2284, %v1313
        %v2299 = vrot.slane %v2298, 7
        %v2300 = vperm.slane %v2285, 0
        %v2301 = vperm.slane %v2285, 1
        %v2302 = vperm.slane %v2287, 0
        %v2303 = vperm.slane %v2287, 1
        %v2304 = vperm.slane %v2289, 0
        %v2305 = vperm.slane %v2289, 1
        %v2306 = vperm.slane %v2291, 0
        %v2307 = vperm.slane %v2291, 1
        %v2308 = vperm.slane %v2293, 0
        %v2309 = vperm.slane %v2293, 1
        %v2310 = vperm.slane %v2295, 0
        %v2311 = vperm.slane %v2295, 1
        %v2312 = vperm.slane %v2297, 0
        %v2313 = vperm.slane %v2297, 1
        %v2314 = vperm.slane %v2299, 0
        %v2315 = vperm.slane %v2299, 1
        %v2332 = vmul.f32 %v2300, %v611
        %v2333 = vmul.f32 %v2301, %v612
        %v2334 = vmul.f32 %v2300, %v613
        %v2335 = vmul.f32 %v2301, %v614
        %v2336 = vmul.f32 %v2300, %v615
        %v2337 = vmul.f32 %v2301, %v616
        %v2338 = vmul.f32 %v2300, %v617
        %v2339 = vmul.f32 %v2301, %v618
        %v2340 = vmul.f32 %v2302, %v611
        %v2341 = vmul.f32 %v2303, %v612
        %v2342 = vmul.f32 %v2302, %v613
        %v2343 = vmul.f32 %v2303, %v614
        %v2344 = vmul.f32 %v2302, %v615
        %v2345 = vmul.f32 %v2303, %v616
        %v2346 = vmul.f32 %v2302, %v617
        %v2347 = vmul.f32 %v2303, %v618
        %v2348 = vmul.f32 %v2304, %v611
        %v2349 = vmul.f32 %v2305, %v612
        %v2350 = vmul.f32 %v2304, %v613
        %v2351 = vmul.f32 %v2305, %v614
        %v2352 = vmul.f32 %v2304, %v615
        %v2353 = vmul.f32 %v2305, %v616
        %v2354 = vmul.f32 %v2304, %v617
        %v2355 = vmul.f32 %v2305, %v618
        %v2356 = vmul.f32 %v2306, %v611
        %v2357 = vmul.f32 %v2307, %v612
        %v2358 = vmul.f32 %v2306, %v613
        %v2359 = vmul.f32 %v2307, %v614
        %v2360 = vmul.f32 %v2306, %v615
        %v2361 = vmul.f32 %v2307, %v616
        %v2362 = vmul.f32 %v2306, %v617
        %v2363 = vmul.f32 %v2307, %v618
        %v2364 = vmul.f32 %v2308, %v611
        %v2365 = vmul.f32 %v2309, %v612
        %v2366 = vmul.f32 %v2308, %v613
        %v2367 = vmul.f32 %v2309, %v614
        %v2368 = vmul.f32 %v2308, %v615
        %v2369 = vmul.f32 %v2309, %v616
        %v2370 = vmul.f32 %v2308, %v617
        %v2371 = vmul.f32 %v2309, %v618
        %v2372 = vmul.f32 %v2310, %v611
        %v2373 = vmul.f32 %v2311, %v612
        %v2374 = vmul.f32 %v2310, %v613
        %v2375 = vmul.f32 %v2311, %v614
        %v2376 = vmul.f32 %v2310, %v615
        %v2377 = vmul.f32 %v2311, %v616
        %v2378 = vmul.f32 %v2310, %v617
        %v2379 = vmul.f32 %v2311, %v618
        %v2380 = vmul.f32 %v2312, %v611
        %v2381 = vmul.f32 %v2313, %v612
        %v2382 = vmul.f32 %v2312, %v613
        %v2383 = vmul.f32 %v2313, %v614
        %v2384 = vmul.f32 %v2312, %v615
        %v2385 = vmul.f32 %v2313, %v616
        %v2386 = vmul.f32 %v2312, %v617
        %v2387 = vmul.f32 %v2313, %v618
        %v2388 = vmul.f32 %v2314, %v611
        %v2389 = vmul.f32 %v2315, %v612
        %v2390 = vmul.f32 %v2314, %v613
        %v2391 = vmul.f32 %v2315, %v614
        %v2392 = vmul.f32 %v2314, %v615
        %v2393 = vmul.f32 %v2315, %v616
        %v2394 = vmul.f32 %v2314, %v617
        %v2395 = vmul.f32 %v2315, %v618
        %v2396 = vadd.f32 %v2218, %v2332
        %v2397 = vadd.f32 %v2219, %v2333
        %v2398 = vadd.f32 %v2220, %v2334
        %v2399 = vadd.f32 %v2221, %v2335
        %v2400 = vadd.f32 %v2222, %v2336
        %v2401 = vadd.f32 %v2223, %v2337
        %v2402 = vadd.f32 %v2224, %v2338
        %v2403 = vadd.f32 %v2225, %v2339
        %v2404 = vadd.f32 %v2226, %v2340
        %v2405 = vadd.f32 %v2227, %v2341
        %v2406 = vadd.f32 %v2228, %v2342
        %v2407 = vadd.f32 %v2229, %v2343
        %v2408 = vadd.f32 %v2230, %v2344
        %v2409 = vadd.f32 %v2231, %v2345
        %v2410 = vadd.f32 %v2232, %v2346
        %v2411 = vadd.f32 %v2233, %v2347
        %v2412 = vadd.f32 %v2234, %v2348
        %v2413 = vadd.f32 %v2235, %v2349
        %v2414 = vadd.f32 %v2236, %v2350
        %v2415 = vadd.f32 %v2237, %v2351
        %v2416 = vadd.f32 %v2238, %v2352
        %v2417 = vadd.f32 %v2239, %v2353
        %v2418 = vadd.f32 %v2240, %v2354
        %v2419 = vadd.f32 %v2241, %v2355
        %v2420 = vadd.f32 %v2242, %v2356
        %v2421 = vadd.f32 %v2243, %v2357
        %v2422 = vadd.f32 %v2244, %v2358
        %v2423 = vadd.f32 %v2245, %v2359
        %v2424 = vadd.f32 %v2246, %v2360
        %v2425 = vadd.f32 %v2247, %v2361
        %v2426 = vadd.f32 %v2248, %v2362
        %v2427 = vadd.f32 %v2249, %v2363
        %v2428 = vadd.f32 %v2250, %v2364
        %v2429 = vadd.f32 %v2251, %v2365
        %v2430 = vadd.f32 %v2252, %v2366
        %v2431 = vadd.f32 %v2253, %v2367
        %v2432 = vadd.f32 %v2254, %v2368
        %v2433 = vadd.f32 %v2255, %v2369
        %v2434 = vadd.f32 %v2256, %v2370
        %v2435 = vadd.f32 %v2257, %v2371
        %v2436 = vadd.f32 %v2258, %v2372
        %v2437 = vadd.f32 %v2259, %v2373
        %v2438 = vadd.f32 %v2260, %v2374
        %v2439 = vadd.f32 %v2261, %v2375
        %v2440 = vadd.f32 %v2262, %v2376
        %v2441 = vadd.f32 %v2263, %v2377
        %v2442 = vadd.f32 %v2264, %v2378
        %v2443 = vadd.f32 %v2265, %v2379
        %v2444 = vadd.f32 %v2266, %v2380
        %v2445 = vadd.f32 %v2267, %v2381
        %v2446 = vadd.f32 %v2268, %v2382
        %v2447 = vadd.f32 %v2269, %v2383
        %v2448 = vadd.f32 %v2270, %v2384
        %v2449 = vadd.f32 %v2271, %v2385
        %v2450 = vadd.f32 %v2272, %v2386
        %v2451 = vadd.f32 %v2273, %v2387
        %v2452 = vadd.f32 %v2274, %v2388
        %v2453 = vadd.f32 %v2275, %v2389
        %v2454 = vadd.f32 %v2276, %v2390
        %v2455 = vadd.f32 %v2277, %v2391
        %v2456 = vadd.f32 %v2278, %v2392
        %v2457 = vadd.f32 %v2279, %v2393
        %v2458 = vadd.f32 %v2280, %v2394
        %v2459 = vadd.f32 %v2281, %v2395
        %v2462 = vrot.slane %v1316, 7
        %v2463 = vsel %vm1457, %v1315, %v2462
        %v2464 = vsel %vm1160, %v1315, %v2462
        %v2465 = vrot.slane %v2464, 1
        %v2466 = vsel %vm1162, %v1315, %v2462
        %v2467 = vrot.slane %v2466, 2
        %v2468 = vsel %vm1164, %v1315, %v2462
        %v2469 = vrot.slane %v2468, 3
        %v2470 = vsel %vm1166, %v1315, %v2462
        %v2471 = vrot.slane %v2470, 4
        %v2472 = vsel %vm1168, %v1315, %v2462
        %v2473 = vrot.slane %v2472, 5
        %v2474 = vsel %vm1170, %v1315, %v2462
        %v2475 = vrot.slane %v2474, 6
        %v2476 = vsel %vm1471, %v2462, %v1315
        %v2477 = vrot.slane %v2476, 7
        %v2478 = vperm.slane %v2463, 0
        %v2479 = vperm.slane %v2463, 1
        %v2480 = vperm.slane %v2465, 0
        %v2481 = vperm.slane %v2465, 1
        %v2482 = vperm.slane %v2467, 0
        %v2483 = vperm.slane %v2467, 1
        %v2484 = vperm.slane %v2469, 0
        %v2485 = vperm.slane %v2469, 1
        %v2486 = vperm.slane %v2471, 0
        %v2487 = vperm.slane %v2471, 1
        %v2488 = vperm.slane %v2473, 0
        %v2489 = vperm.slane %v2473, 1
        %v2490 = vperm.slane %v2475, 0
        %v2491 = vperm.slane %v2475, 1
        %v2492 = vperm.slane %v2477, 0
        %v2493 = vperm.slane %v2477, 1
        %v2510 = vmul.f32 %v2478, %v619
        %v2511 = vmul.f32 %v2479, %v620
        %v2512 = vmul.f32 %v2478, %v621
        %v2513 = vmul.f32 %v2479, %v622
        %v2514 = vmul.f32 %v2478, %v623
        %v2515 = vmul.f32 %v2479, %v624
        %v2516 = vmul.f32 %v2478, %v625
        %v2517 = vmul.f32 %v2479, %v626
        %v2518 = vmul.f32 %v2480, %v619
        %v2519 = vmul.f32 %v2481, %v620
        %v2520 = vmul.f32 %v2480, %v621
        %v2521 = vmul.f32 %v2481, %v622
        %v2522 = vmul.f32 %v2480, %v623
        %v2523 = vmul.f32 %v2481, %v624
        %v2524 = vmul.f32 %v2480, %v625
        %v2525 = vmul.f32 %v2481, %v626
        %v2526 = vmul.f32 %v2482, %v619
        %v2527 = vmul.f32 %v2483, %v620
        %v2528 = vmul.f32 %v2482, %v621
        %v2529 = vmul.f32 %v2483, %v622
        %v2530 = vmul.f32 %v2482, %v623
        %v2531 = vmul.f32 %v2483, %v624
        %v2532 = vmul.f32 %v2482, %v625
        %v2533 = vmul.f32 %v2483, %v626
        %v2534 = vmul.f32 %v2484, %v619
        %v2535 = vmul.f32 %v2485, %v620
        %v2536 = vmul.f32 %v2484, %v621
        %v2537 = vmul.f32 %v2485, %v622
        %v2538 = vmul.f32 %v2484, %v623
        %v2539 = vmul.f32 %v2485, %v624
        %v2540 = vmul.f32 %v2484, %v625
        %v2541 = vmul.f32 %v2485, %v626
        %v2542 = vmul.f32 %v2486, %v619
        %v2543 = vmul.f32 %v2487, %v620
        %v2544 = vmul.f32 %v2486, %v621
        %v2545 = vmul.f32 %v2487, %v622
        %v2546 = vmul.f32 %v2486, %v623
        %v2547 = vmul.f32 %v2487, %v624
        %v2548 = vmul.f32 %v2486, %v625
        %v2549 = vmul.f32 %v2487, %v626
        %v2550 = vmul.f32 %v2488, %v619
        %v2551 = vmul.f32 %v2489, %v620
        %v2552 = vmul.f32 %v2488, %v621
        %v2553 = vmul.f32 %v2489, %v622
        %v2554 = vmul.f32 %v2488, %v623
        %v2555 = vmul.f32 %v2489, %v624
        %v2556 = vmul.f32 %v2488, %v625
        %v2557 = vmul.f32 %v2489, %v626
        %v2558 = vmul.f32 %v2490, %v619
        %v2559 = vmul.f32 %v2491, %v620
        %v2560 = vmul.f32 %v2490, %v621
        %v2561 = vmul.f32 %v2491, %v622
        %v2562 = vmul.f32 %v2490, %v623
        %v2563 = vmul.f32 %v2491, %v624
        %v2564 = vmul.f32 %v2490, %v625
        %v2565 = vmul.f32 %v2491, %v626
        %v2566 = vmul.f32 %v2492, %v619
        %v2567 = vmul.f32 %v2493, %v620
        %v2568 = vmul.f32 %v2492, %v621
        %v2569 = vmul.f32 %v2493, %v622
        %v2570 = vmul.f32 %v2492, %v623
        %v2571 = vmul.f32 %v2493, %v624
        %v2572 = vmul.f32 %v2492, %v625
        %v2573 = vmul.f32 %v2493, %v626
        %v2574 = vadd.f32 %v2396, %v2510
        %v2575 = vadd.f32 %v2397, %v2511
        %v2576 = vadd.f32 %v2398, %v2512
        %v2577 = vadd.f32 %v2399, %v2513
        %v2578 = vadd.f32 %v2400, %v2514
        %v2579 = vadd.f32 %v2401, %v2515
        %v2580 = vadd.f32 %v2402, %v2516
        %v2581 = vadd.f32 %v2403, %v2517
        %v2582 = vadd.f32 %v2404, %v2518
        %v2583 = vadd.f32 %v2405, %v2519
        %v2584 = vadd.f32 %v2406, %v2520
        %v2585 = vadd.f32 %v2407, %v2521
        %v2586 = vadd.f32 %v2408, %v2522
        %v2587 = vadd.f32 %v2409, %v2523
        %v2588 = vadd.f32 %v2410, %v2524
        %v2589 = vadd.f32 %v2411, %v2525
        %v2590 = vadd.f32 %v2412, %v2526
        %v2591 = vadd.f32 %v2413, %v2527
        %v2592 = vadd.f32 %v2414, %v2528
        %v2593 = vadd.f32 %v2415, %v2529
        %v2594 = vadd.f32 %v2416, %v2530
        %v2595 = vadd.f32 %v2417, %v2531
        %v2596 = vadd.f32 %v2418, %v2532
        %v2597 = vadd.f32 %v2419, %v2533
        %v2598 = vadd.f32 %v2420, %v2534
        %v2599 = vadd.f32 %v2421, %v2535
        %v2600 = vadd.f32 %v2422, %v2536
        %v2601 = vadd.f32 %v2423, %v2537
        %v2602 = vadd.f32 %v2424, %v2538
        %v2603 = vadd.f32 %v2425, %v2539
        %v2604 = vadd.f32 %v2426, %v2540
        %v2605 = vadd.f32 %v2427, %v2541
        %v2606 = vadd.f32 %v2428, %v2542
        %v2607 = vadd.f32 %v2429, %v2543
        %v2608 = vadd.f32 %v2430, %v2544
        %v2609 = vadd.f32 %v2431, %v2545
        %v2610 = vadd.f32 %v2432, %v2546
        %v2611 = vadd.f32 %v2433, %v2547
        %v2612 = vadd.f32 %v2434, %v2548
        %v2613 = vadd.f32 %v2435, %v2549
        %v2614 = vadd.f32 %v2436, %v2550
        %v2615 = vadd.f32 %v2437, %v2551
        %v2616 = vadd.f32 %v2438, %v2552
        %v2617 = vadd.f32 %v2439, %v2553
        %v2618 = vadd.f32 %v2440, %v2554
        %v2619 = vadd.f32 %v2441, %v2555
        %v2620 = vadd.f32 %v2442, %v2556
        %v2621 = vadd.f32 %v2443, %v2557
        %v2622 = vadd.f32 %v2444, %v2558
        %v2623 = vadd.f32 %v2445, %v2559
        %v2624 = vadd.f32 %v2446, %v2560
        %v2625 = vadd.f32 %v2447, %v2561
        %v2626 = vadd.f32 %v2448, %v2562
        %v2627 = vadd.f32 %v2449, %v2563
        %v2628 = vadd.f32 %v2450, %v2564
        %v2629 = vadd.f32 %v2451, %v2565
        %v2630 = vadd.f32 %v2452, %v2566
        %v2631 = vadd.f32 %v2453, %v2567
        %v2632 = vadd.f32 %v2454, %v2568
        %v2633 = vadd.f32 %v2455, %v2569
        %v2634 = vadd.f32 %v2456, %v2570
        %v2635 = vadd.f32 %v2457, %v2571
        %v2636 = vadd.f32 %v2458, %v2572
        %v2637 = vadd.f32 %v2459, %v2573
        %v2640 = vrot.slane %v1318, 7
        %v2641 = vsel %vm1457, %v1317, %v2640
        %v2642 = vsel %vm1160, %v1317, %v2640
        %v2643 = vrot.slane %v2642, 1
        %v2644 = vsel %vm1162, %v1317, %v2640
        %v2645 = vrot.slane %v2644, 2
        %v2646 = vsel %vm1164, %v1317, %v2640
        %v2647 = vrot.slane %v2646, 3
        %v2648 = vsel %vm1166, %v1317, %v2640
        %v2649 = vrot.slane %v2648, 4
        %v2650 = vsel %vm1168, %v1317, %v2640
        %v2651 = vrot.slane %v2650, 5
        %v2652 = vsel %vm1170, %v1317, %v2640
        %v2653 = vrot.slane %v2652, 6
        %v2654 = vsel %vm1471, %v2640, %v1317
        %v2655 = vrot.slane %v2654, 7
        %v2656 = vperm.slane %v2641, 0
        %v2657 = vperm.slane %v2641, 1
        %v2658 = vperm.slane %v2643, 0
        %v2659 = vperm.slane %v2643, 1
        %v2660 = vperm.slane %v2645, 0
        %v2661 = vperm.slane %v2645, 1
        %v2662 = vperm.slane %v2647, 0
        %v2663 = vperm.slane %v2647, 1
        %v2664 = vperm.slane %v2649, 0
        %v2665 = vperm.slane %v2649, 1
        %v2666 = vperm.slane %v2651, 0
        %v2667 = vperm.slane %v2651, 1
        %v2668 = vperm.slane %v2653, 0
        %v2669 = vperm.slane %v2653, 1
        %v2670 = vperm.slane %v2655, 0
        %v2671 = vperm.slane %v2655, 1
        %v2688 = vmul.f32 %v2656, %v627
        %v2689 = vmul.f32 %v2657, %v628
        %v2690 = vmul.f32 %v2656, %v629
        %v2691 = vmul.f32 %v2657, %v630
        %v2692 = vmul.f32 %v2656, %v631
        %v2693 = vmul.f32 %v2657, %v632
        %v2694 = vmul.f32 %v2656, %v633
        %v2695 = vmul.f32 %v2657, %v634
        %v2696 = vmul.f32 %v2658, %v627
        %v2697 = vmul.f32 %v2659, %v628
        %v2698 = vmul.f32 %v2658, %v629
        %v2699 = vmul.f32 %v2659, %v630
        %v2700 = vmul.f32 %v2658, %v631
        %v2701 = vmul.f32 %v2659, %v632
        %v2702 = vmul.f32 %v2658, %v633
        %v2703 = vmul.f32 %v2659, %v634
        %v2704 = vmul.f32 %v2660, %v627
        %v2705 = vmul.f32 %v2661, %v628
        %v2706 = vmul.f32 %v2660, %v629
        %v2707 = vmul.f32 %v2661, %v630
        %v2708 = vmul.f32 %v2660, %v631
        %v2709 = vmul.f32 %v2661, %v632
        %v2710 = vmul.f32 %v2660, %v633
        %v2711 = vmul.f32 %v2661, %v634
        %v2712 = vmul.f32 %v2662, %v627
        %v2713 = vmul.f32 %v2663, %v628
        %v2714 = vmul.f32 %v2662, %v629
        %v2715 = vmul.f32 %v2663, %v630
        %v2716 = vmul.f32 %v2662, %v631
        %v2717 = vmul.f32 %v2663, %v632
        %v2718 = vmul.f32 %v2662, %v633
        %v2719 = vmul.f32 %v2663, %v634
        %v2720 = vmul.f32 %v2664, %v627
        %v2721 = vmul.f32 %v2665, %v628
        %v2722 = vmul.f32 %v2664, %v629
        %v2723 = vmul.f32 %v2665, %v630
        %v2724 = vmul.f32 %v2664, %v631
        %v2725 = vmul.f32 %v2665, %v632
        %v2726 = vmul.f32 %v2664, %v633
        %v2727 = vmul.f32 %v2665, %v634
        %v2728 = vmul.f32 %v2666, %v627
        %v2729 = vmul.f32 %v2667, %v628
        %v2730 = vmul.f32 %v2666, %v629
        %v2731 = vmul.f32 %v2667, %v630
        %v2732 = vmul.f32 %v2666, %v631
        %v2733 = vmul.f32 %v2667, %v632
        %v2734 = vmul.f32 %v2666, %v633
        %v2735 = vmul.f32 %v2667, %v634
        %v2736 = vmul.f32 %v2668, %v627
        %v2737 = vmul.f32 %v2669, %v628
        %v2738 = vmul.f32 %v2668, %v629
        %v2739 = vmul.f32 %v2669, %v630
        %v2740 = vmul.f32 %v2668, %v631
        %v2741 = vmul.f32 %v2669, %v632
        %v2742 = vmul.f32 %v2668, %v633
        %v2743 = vmul.f32 %v2669, %v634
        %v2744 = vmul.f32 %v2670, %v627
        %v2745 = vmul.f32 %v2671, %v628
        %v2746 = vmul.f32 %v2670, %v629
        %v2747 = vmul.f32 %v2671, %v630
        %v2748 = vmul.f32 %v2670, %v631
        %v2749 = vmul.f32 %v2671, %v632
        %v2750 = vmul.f32 %v2670, %v633
        %v2751 = vmul.f32 %v2671, %v634
        %v2752 = vadd.f32 %v2574, %v2688
        %v2753 = vadd.f32 %v2575, %v2689
        %v2754 = vadd.f32 %v2576, %v2690
        %v2755 = vadd.f32 %v2577, %v2691
        %v2756 = vadd.f32 %v2578, %v2692
        %v2757 = vadd.f32 %v2579, %v2693
        %v2758 = vadd.f32 %v2580, %v2694
        %v2759 = vadd.f32 %v2581, %v2695
        %v2760 = vadd.f32 %v2582, %v2696
        %v2761 = vadd.f32 %v2583, %v2697
        %v2762 = vadd.f32 %v2584, %v2698
        %v2763 = vadd.f32 %v2585, %v2699
        %v2764 = vadd.f32 %v2586, %v2700
        %v2765 = vadd.f32 %v2587, %v2701
        %v2766 = vadd.f32 %v2588, %v2702
        %v2767 = vadd.f32 %v2589, %v2703
        %v2768 = vadd.f32 %v2590, %v2704
        %v2769 = vadd.f32 %v2591, %v2705
        %v2770 = vadd.f32 %v2592, %v2706
        %v2771 = vadd.f32 %v2593, %v2707
        %v2772 = vadd.f32 %v2594, %v2708
        %v2773 = vadd.f32 %v2595, %v2709
        %v2774 = vadd.f32 %v2596, %v2710
        %v2775 = vadd.f32 %v2597, %v2711
        %v2776 = vadd.f32 %v2598, %v2712
        %v2777 = vadd.f32 %v2599, %v2713
        %v2778 = vadd.f32 %v2600, %v2714
        %v2779 = vadd.f32 %v2601, %v2715
        %v2780 = vadd.f32 %v2602, %v2716
        %v2781 = vadd.f32 %v2603, %v2717
        %v2782 = vadd.f32 %v2604, %v2718
        %v2783 = vadd.f32 %v2605, %v2719
        %v2784 = vadd.f32 %v2606, %v2720
        %v2785 = vadd.f32 %v2607, %v2721
        %v2786 = vadd.f32 %v2608, %v2722
        %v2787 = vadd.f32 %v2609, %v2723
        %v2788 = vadd.f32 %v2610, %v2724
        %v2789 = vadd.f32 %v2611, %v2725
        %v2790 = vadd.f32 %v2612, %v2726
        %v2791 = vadd.f32 %v2613, %v2727
        %v2792 = vadd.f32 %v2614, %v2728
        %v2793 = vadd.f32 %v2615, %v2729
        %v2794 = vadd.f32 %v2616, %v2730
        %v2795 = vadd.f32 %v2617, %v2731
        %v2796 = vadd.f32 %v2618, %v2732
        %v2797 = vadd.f32 %v2619, %v2733
        %v2798 = vadd.f32 %v2620, %v2734
        %v2799 = vadd.f32 %v2621, %v2735
        %v2800 = vadd.f32 %v2622, %v2736
        %v2801 = vadd.f32 %v2623, %v2737
        %v2802 = vadd.f32 %v2624, %v2738
        %v2803 = vadd.f32 %v2625, %v2739
        %v2804 = vadd.f32 %v2626, %v2740
        %v2805 = vadd.f32 %v2627, %v2741
        %v2806 = vadd.f32 %v2628, %v2742
        %v2807 = vadd.f32 %v2629, %v2743
        %v2808 = vadd.f32 %v2630, %v2744
        %v2809 = vadd.f32 %v2631, %v2745
        %v2810 = vadd.f32 %v2632, %v2746
        %v2811 = vadd.f32 %v2633, %v2747
        %v2812 = vadd.f32 %v2634, %v2748
        %v2813 = vadd.f32 %v2635, %v2749
        %v2814 = vadd.f32 %v2636, %v2750
        %v2815 = vadd.f32 %v2637, %v2751
        %v2816 = vperm.slane %v635, 2
        %v2817 = vlaneseq
        %v2818 = vshrl.u32 %v2817, 7
        %2820 = vset.pattern.permute.xlu0 %v2818
        %2821 = vperm.xlu0 %2820, %v2816
        %v2822 = vpop.permute.xlu0 %2821
        %v2823 = vlaneseq
        %v2824 = vshrl.u32 %v2823, 7
        %v2825 = vadd.s32 %v2824, 8
        %2826 = vset.pattern.permute.xlu0 %v2825
        %2827 = vperm.xlu0 %2826, %v2816
        %v2828 = vpop.permute.xlu0 %2827
        %v2829 = vlaneseq
        %v2830 = vshrl.u32 %v2829, 7
        %v2831 = vadd.s32 %v2830, 16
        %2832 = vset.pattern.permute.xlu0 %v2831
        %2833 = vperm.xlu0 %2832, %v2816
        %v2834 = vpop.permute.xlu0 %2833
        %v2835 = vlaneseq
        %v2836 = vshrl.u32 %v2835, 7
        %v2837 = vadd.s32 %v2836, 24
        %2838 = vset.pattern.permute.xlu0 %v2837
        %2839 = vperm.xlu0 %2838, %v2816
        %v2840 = vpop.permute.xlu0 %2839
        %v2841 = vmul.f32 %v2822, %v2752
        %v2842 = vmul.f32 %v2822, %v2753
        %v2843 = vmul.f32 %v2828, %v2754
        %v2844 = vmul.f32 %v2828, %v2755
        %v2845 = vmul.f32 %v2834, %v2756
        %v2846 = vmul.f32 %v2834, %v2757
        %v2847 = vmul.f32 %v2840, %v2758
        %v2848 = vmul.f32 %v2840, %v2759
        %v2849 = vmul.f32 %v2822, %v2760
        %v2850 = vmul.f32 %v2822, %v2761
        %v2851 = vmul.f32 %v2828, %v2762
        %v2852 = vmul.f32 %v2828, %v2763
        %v2853 = vmul.f32 %v2834, %v2764
        %v2854 = vmul.f32 %v2834, %v2765
        %v2855 = vmul.f32 %v2840, %v2766
        %v2856 = vmul.f32 %v2840, %v2767
        %v2857 = vmul.f32 %v2822, %v2768
        %v2858 = vmul.f32 %v2822, %v2769
        %v2859 = vmul.f32 %v2828, %v2770
        %v2860 = vmul.f32 %v2828, %v2771
        %v2861 = vmul.f32 %v2834, %v2772
        %v2862 = vmul.f32 %v2834, %v2773
        %v2863 = vmul.f32 %v2840, %v2774
        %v2864 = vmul.f32 %v2840, %v2775
        %v2865 = vmul.f32 %v2822, %v2776
        %v2866 = vmul.f32 %v2822, %v2777
        %v2867 = vmul.f32 %v2828, %v2778
        %v2868 = vmul.f32 %v2828, %v2779
        %v2869 = vmul.f32 %v2834, %v2780
        %v2870 = vmul.f32 %v2834, %v2781
        %v2871 = vmul.f32 %v2840, %v2782
        %v2872 = vmul.f32 %v2840, %v2783
        %v2873 = vmul.f32 %v2822, %v2784
        %v2874 = vmul.f32 %v2822, %v2785
        %v2875 = vmul.f32 %v2828, %v2786
        %v2876 = vmul.f32 %v2828, %v2787
        %v2877 = vmul.f32 %v2834, %v2788
        %v2878 = vmul.f32 %v2834, %v2789
        %v2879 = vmul.f32 %v2840, %v2790
        %v2880 = vmul.f32 %v2840, %v2791
        %v2881 = vmul.f32 %v2822, %v2792
        %v2882 = vmul.f32 %v2822, %v2793
        %v2883 = vmul.f32 %v2828, %v2794
        %v2884 = vmul.f32 %v2828, %v2795
        %v2885 = vmul.f32 %v2834, %v2796
        %v2886 = vmul.f32 %v2834, %v2797
        %v2887 = vmul.f32 %v2840, %v2798
        %v2888 = vmul.f32 %v2840, %v2799
        %v2889 = vmul.f32 %v2822, %v2800
        %v2890 = vmul.f32 %v2822, %v2801
        %v2891 = vmul.f32 %v2828, %v2802
        %v2892 = vmul.f32 %v2828, %v2803
        %v2893 = vmul.f32 %v2834, %v2804
        %v2894 = vmul.f32 %v2834, %v2805
        %v2895 = vmul.f32 %v2840, %v2806
        %v2896 = vmul.f32 %v2840, %v2807
        %v2897 = vmul.f32 %v2822, %v2808
        %v2898 = vmul.f32 %v2822, %v2809
        %v2899 = vmul.f32 %v2828, %v2810
        %v2900 = vmul.f32 %v2828, %v2811
        %v2901 = vmul.f32 %v2834, %v2812
        %v2902 = vmul.f32 %v2834, %v2813
        %v2903 = vmul.f32 %v2840, %v2814
        %v2904 = vmul.f32 %v2840, %v2815
        %v2905 = vadd.f32 %v2841, %v306
        %v2906 = vadd.f32 %v2842, %v307
        %v2907 = vadd.f32 %v2843, %v308
        %v2908 = vadd.f32 %v2844, %v309
        %v2909 = vadd.f32 %v2845, %v310
        %v2910 = vadd.f32 %v2846, %v311
        %v2911 = vadd.f32 %v2847, %v312
        %v2912 = vadd.f32 %v2848, %v313
        %v2913 = vadd.f32 %v2849, %v314
        %v2914 = vadd.f32 %v2850, %v315
        %v2915 = vadd.f32 %v2851, %v316
        %v2916 = vadd.f32 %v2852, %v317
        %v2917 = vadd.f32 %v2853, %v318
        %v2918 = vadd.f32 %v2854, %v319
        %v2919 = vadd.f32 %v2855, %v320
        %v2920 = vadd.f32 %v2856, %v321
        %v2921 = vadd.f32 %v2857, %v322
        %v2922 = vadd.f32 %v2858, %v323
        %v2923 = vadd.f32 %v2859, %v324
        %v2924 = vadd.f32 %v2860, %v325
        %v2925 = vadd.f32 %v2861, %v326
        %v2926 = vadd.f32 %v2862, %v327
        %v2927 = vadd.f32 %v2863, %v328
        %v2928 = vadd.f32 %v2864, %v329
        %v2929 = vadd.f32 %v2865, %v330
        %v2930 = vadd.f32 %v2866, %v331
        %v2931 = vadd.f32 %v2867, %v332
        %v2932 = vadd.f32 %v2868, %v333
        %v2933 = vadd.f32 %v2869, %v334
        %v2934 = vadd.f32 %v2870, %v335
        %v2935 = vadd.f32 %v2871, %v336
        %v2936 = vadd.f32 %v2872, %v337
        %v2937 = vadd.f32 %v2873, %v338
        %v2938 = vadd.f32 %v2874, %v339
        %v2939 = vadd.f32 %v2875, %v340
        %v2940 = vadd.f32 %v2876, %v341
        %v2941 = vadd.f32 %v2877, %v342
        %v2942 = vadd.f32 %v2878, %v343
        %v2943 = vadd.f32 %v2879, %v344
        %v2944 = vadd.f32 %v2880, %v345
        %v2945 = vadd.f32 %v2881, %v346
        %v2946 = vadd.f32 %v2882, %v347
        %v2947 = vadd.f32 %v2883, %v348
        %v2948 = vadd.f32 %v2884, %v349
        %v2949 = vadd.f32 %v2885, %v350
        %v2950 = vadd.f32 %v2886, %v351
        %v2951 = vadd.f32 %v2887, %v352
        %v2952 = vadd.f32 %v2888, %v353
        %v2953 = vadd.f32 %v2889, %v354
        %v2954 = vadd.f32 %v2890, %v355
        %v2955 = vadd.f32 %v2891, %v356
        %v2956 = vadd.f32 %v2892, %v357
        %v2957 = vadd.f32 %v2893, %v358
        %v2958 = vadd.f32 %v2894, %v359
        %v2959 = vadd.f32 %v2895, %v360
        %v2960 = vadd.f32 %v2896, %v361
        %v2961 = vadd.f32 %v2897, %v362
        %v2962 = vadd.f32 %v2898, %v363
        %v2963 = vadd.f32 %v2899, %v364
        %v2964 = vadd.f32 %v2900, %v365
        %v2965 = vadd.f32 %v2901, %v366
        %v2966 = vadd.f32 %v2902, %v367
        %v2967 = vadd.f32 %v2903, %v368
        %v2968 = vadd.f32 %v2904, %v369
        %2969 = vst [vmem:[%s287] sm:$0xff] %v2905
        %2970 = vst [vmem:[%s287 + $0x8] sm:$0xff] %v2906
        %2971 = vst [vmem:[%s287 + $0x10] sm:$0xff] %v2907
        %2972 = vst [vmem:[%s287 + $0x18] sm:$0xff] %v2908
        %2973 = vst [vmem:[%s287 + $0x20] sm:$0xff] %v2909
        %2974 = vst [vmem:[%s287 + $0x28] sm:$0xff] %v2910
        %2975 = vst [vmem:[%s287 + $0x30] sm:$0xff] %v2911
        %2976 = vst [vmem:[%s287 + $0x38] sm:$0xff] %v2912
        %2977 = vst [vmem:[%s287 + $0x40] sm:$0xff] %v2913
        %2978 = vst [vmem:[%s287 + $0x48] sm:$0xff] %v2914
        %2979 = vst [vmem:[%s287 + $0x50] sm:$0xff] %v2915
        %2980 = vst [vmem:[%s287 + $0x58] sm:$0xff] %v2916
        %2981 = vst [vmem:[%s287 + $0x60] sm:$0xff] %v2917
        %2982 = vst [vmem:[%s287 + $0x68] sm:$0xff] %v2918
        %2983 = vst [vmem:[%s287 + $0x70] sm:$0xff] %v2919
        %2984 = vst [vmem:[%s287 + $0x78] sm:$0xff] %v2920
        %2985 = vst [vmem:[%s287 + $0x80] sm:$0xff] %v2921
        %2986 = vst [vmem:[%s287 + $0x88] sm:$0xff] %v2922
        %2987 = vst [vmem:[%s287 + $0x90] sm:$0xff] %v2923
        %2988 = vst [vmem:[%s287 + $0x98] sm:$0xff] %v2924
        %2989 = vst [vmem:[%s287 + $0xa0] sm:$0xff] %v2925
        %2990 = vst [vmem:[%s287 + $0xa8] sm:$0xff] %v2926
        %2991 = vst [vmem:[%s287 + $0xb0] sm:$0xff] %v2927
        %2992 = vst [vmem:[%s287 + $0xb8] sm:$0xff] %v2928
        %2993 = vst [vmem:[%s287 + $0xc0] sm:$0xff] %v2929
        %2994 = vst [vmem:[%s287 + $0xc8] sm:$0xff] %v2930
        %2995 = vst [vmem:[%s287 + $0xd0] sm:$0xff] %v2931
        %2996 = vst [vmem:[%s287 + $0xd8] sm:$0xff] %v2932
        %2997 = vst [vmem:[%s287 + $0xe0] sm:$0xff] %v2933
        %2998 = vst [vmem:[%s287 + $0xe8] sm:$0xff] %v2934
        %2999 = vst [vmem:[%s287 + $0xf0] sm:$0xff] %v2935
        %3000 = vst [vmem:[%s287 + $0xf8] sm:$0xff] %v2936
        %3001 = vst [vmem:[%s287 + $0x100] sm:$0xff] %v2937
        %3002 = vst [vmem:[%s287 + $0x108] sm:$0xff] %v2938
        %3003 = vst [vmem:[%s287 + $0x110] sm:$0xff] %v2939
        %3004 = vst [vmem:[%s287 + $0x118] sm:$0xff] %v2940
        %3005 = vst [vmem:[%s287 + $0x120] sm:$0xff] %v2941
        %3006 = vst [vmem:[%s287 + $0x128] sm:$0xff] %v2942
        %3007 = vst [vmem:[%s287 + $0x130] sm:$0xff] %v2943
        %3008 = vst [vmem:[%s287 + $0x138] sm:$0xff] %v2944
        %3009 = vst [vmem:[%s287 + $0x140] sm:$0xff] %v2945
        %3010 = vst [vmem:[%s287 + $0x148] sm:$0xff] %v2946
        %3011 = vst [vmem:[%s287 + $0x150] sm:$0xff] %v2947
        %3012 = vst [vmem:[%s287 + $0x158] sm:$0xff] %v2948
        %3013 = vst [vmem:[%s287 + $0x160] sm:$0xff] %v2949
        %3014 = vst [vmem:[%s287 + $0x168] sm:$0xff] %v2950
        %3015 = vst [vmem:[%s287 + $0x170] sm:$0xff] %v2951
        %3016 = vst [vmem:[%s287 + $0x178] sm:$0xff] %v2952
        %3017 = vst [vmem:[%s287 + $0x180] sm:$0xff] %v2953
        %3018 = vst [vmem:[%s287 + $0x188] sm:$0xff] %v2954
        %3019 = vst [vmem:[%s287 + $0x190] sm:$0xff] %v2955
        %3020 = vst [vmem:[%s287 + $0x198] sm:$0xff] %v2956
        %3021 = vst [vmem:[%s287 + $0x1a0] sm:$0xff] %v2957
        %3022 = vst [vmem:[%s287 + $0x1a8] sm:$0xff] %v2958
        %3023 = vst [vmem:[%s287 + $0x1b0] sm:$0xff] %v2959
        %3024 = vst [vmem:[%s287 + $0x1b8] sm:$0xff] %v2960
        %3025 = vst [vmem:[%s287 + $0x1c0] sm:$0xff] %v2961
        %3026 = vst [vmem:[%s287 + $0x1c8] sm:$0xff] %v2962
        %3027 = vst [vmem:[%s287 + $0x1d0] sm:$0xff] %v2963
        %3028 = vst [vmem:[%s287 + $0x1d8] sm:$0xff] %v2964
        %3029 = vst [vmem:[%s287 + $0x1e0] sm:$0xff] %v2965
        %3030 = vst [vmem:[%s287 + $0x1e8] sm:$0xff] %v2966
        %3031 = vst [vmem:[%s287 + $0x1f0] sm:$0xff] %v2967
        %3032 = vst [vmem:[%s287 + $0x1f8] sm:$0xff] %v2968
        // Predicated region
        $region49: #{tpu_custom_call.1} parent=31 // pred_check
          %p3033 = pneg %p300
        $region50: #{tpu_custom_call.1} parent=31 // pred_check_branch
          %3035 = sbr.rel (%p3033) target = $region52
        $region51: #{tpu_custom_call.1} parent=31 // pred_region
          %v3036 = vld [vmem:[#allocation2] sm:$0xff]
          %v3037 = vmul.f32 %v3036, 0.00048828125
          %3038 = vst.msk [vmem:[%s299] sm:$0xff] %vm1452, %v3037
        $region52: #{tpu_custom_call.1} parent=31 // pred_fallthru
          _
        %s3039 = sand.u32 %s120, 1
        %s3040 = scalar_lea.sflag [#allocation5], %s3039
        %s3041 = sand.u32 %s120, 1
        %s3042 = smul.addr %s3041, 512
        %s3043 = scalar_lea.vmem [#allocation9], %s3042
        %p3044 = scmp.lt.s32.totalorder %s27, 1
        %s3045 = scalar_select %p3044, %s27, 1
        %s3046 = smul.addr %s3045, 8
        %s3047 = scalar_lea.vmem %s4, %s3046
        // Predicated region
        $region53: #{tpu_custom_call.1} parent=31 // pred_check
          %p3048 = pneg %p130
        $region54: #{tpu_custom_call.1} parent=31 // pred_check_branch
          %3050 = sbr.rel (%p3048) target = $region56
        $region55: #{tpu_custom_call.1} parent=31 // pred_region
          %s3051 = smul.u32 2, %s28
          %3053 = vsyncadd %s3040, 0
          %s3054 = smul.addr %s27, 64
          %s3055 = sadd.s32 %s3051, %s3054
          %s3056 = smul.addr %s3055, 8
          %s3057 = scalar_lea.hbm %s3, %s3056
          %s3058 = sshll.u32 %s3043, 4
          %s3059 = int_to_ptr.vmem [resolvable:$true] %s3058
          %s3060 = sshll.u32 %s3057, 4
          %s3061 = int_to_ptr.hbm [resolvable:$true] %s3060
          %3066 = dma.vmem_to_hbm [thread:$0]  %s3059, 8192, %s3061, %s3040, 256, 256, 16
        $region56: #{tpu_custom_call.1} parent=31 // pred_fallthru
          _
        // Predicated region
        $region57: #{tpu_custom_call.1} parent=31 // pred_check
          %p3067 = pneg %p156
        $region58: #{tpu_custom_call.1} parent=31 // pred_check_branch
          %3069 = sbr.rel (%p3067) target = $region60
        $region59: #{tpu_custom_call.1} parent=31 // pred_region
          _
        $region60: #{tpu_custom_call.1} parent=31 // pred_fallthru
          _
      $region32: #{tpu_custom_call.1} parent=5 // pred_fallthru
        _
      %p3070 = scmp.le.s32.totalorder 2, %s18
      // Predicated region
      $region61: #{tpu_custom_call.1} parent=5 // pred_check
        %p3071 = pneg %p3070
      $region62: #{tpu_custom_call.1} parent=5 // pred_check_branch
        %3073 = sbr.rel (%p3071) target = $region64
      $region63: #{tpu_custom_call.1} parent=5 // pred_region
        %s3074 = ssub.s32 %s18, 2
        // Predicated region
        $region65: #{tpu_custom_call.1} parent=63 // pred_check
          %p3075 = pneg %p136
        $region66: #{tpu_custom_call.1} parent=63 // pred_check_branch
          %3077 = sbr.rel (%p3075) target = $region68
        $region67: #{tpu_custom_call.1} parent=63 // pred_region
          %s3078 = sand.u32 %s121, 1
          %s3079 = scalar_lea.sflag [#allocation5], %s3078
          %s3080 = sand.u32 %s121, 1
          %s3081 = smul.addr %s3080, 512
          %s3082 = scalar_lea.vmem [#allocation9], %s3081
          %3084 = dma.done %s3079, 8192
        $region68: #{tpu_custom_call.1} parent=63 // pred_fallthru
          _
        // Predicated region
        $region69: #{tpu_custom_call.1} parent=63 // pred_check
          %p3085 = pneg %p162
        $region70: #{tpu_custom_call.1} parent=63 // pred_check_branch
          %3087 = sbr.rel (%p3085) target = $region72
        $region71: #{tpu_custom_call.1} parent=63 // pred_region
          %p3088 = scmp.lt.s32.totalorder %s29, 1
          %s3089 = scalar_select %p3088, %s29, 1
          %s3090 = smul.addr %s3089, 8
          %s3091 = scalar_lea.vmem %s4, %s3090
        $region72: #{tpu_custom_call.1} parent=63 // pred_fallthru
          _
      $region64: #{tpu_custom_call.1} parent=5 // pred_fallthru
        _
    $region6: #{tpu_custom_call.1} parent=1 // loop_footer
      %s22 = sadd.s32 1, %s18
    $region7: #{tpu_custom_call.1} parent=1 // loop_footer_branch
      %17 = sbr.rel target = $region3
    $region8: #{tpu_custom_call.1} parent=1 // loop_exit
      _
    %3092 = vsyncpa [#allocation4], 1
    %s3093 = scalar_lea.sflag [#allocation4], 1
    %3094 = vsyncpa %s3093, 1
    %3095 = vsyncpa [#allocation7], 1
    %s3096 = scalar_lea.sflag [#allocation7], 1
    %3097 = vsyncpa %s3096, 1
    %3098 = vsyncpa [#allocation5], 1
    %s3099 = scalar_lea.sflag [#allocation5], 1
    %3100 = vsyncpa %s3099, 1

</llo_original>
